<compile_context>
chip_gen: v7x
topology: tpu7x:2x2x1
jax: 0.10.0
libtpu: 0.0.40
codegen_flags: <defaults>
</compile_context>

<pallas_src>
import functools

import jax
import jax.numpy as jnp
from jax import lax
from jax.experimental import pallas as pl
from jax.experimental.pallas import tpu as pltpu

KSIZE = 7
PAD = KSIZE // 2


def _spatial_attn_kernel(w_ref, b_ref, xm_ref, ym_ref, x_ref, o_ref, *, G, C, H, W):
    # w_ref : SMEM (2*49,) f32  -- [avg weights (already /C), max weights]
    # b_ref : SMEM (1,)    f32  -- conv bias
    # xm_ref: VMEM (7, HW) f32  -- horizontal-tap validity masks (0/1)
    # ym_ref: VMEM (7, HW) f32  -- vertical-tap validity masks (0/1)
    # x_ref : VMEM (G, C, HW)   -- lane-dense input block
    # o_ref : VMEM (G, HW)      -- lane-dense output block
    HW = H * W

    # ---- fused single-pass channel reduction (sum + max), lane-dense ----
    cs0 = min(8, C)
    chunk = x_ref[:, 0:cs0, :].astype(jnp.float32)          # (G, cs, HW)
    acc_s = jnp.sum(chunk, axis=1)                          # (G, HW) channel sum
    acc_m = jnp.max(chunk, axis=1)                          # (G, HW) channel max
    for c0 in range(cs0, C, 8):
        cs = min(8, C - c0)
        chunk = x_ref[:, c0:c0 + cs, :].astype(jnp.float32)
        acc_s = acc_s + jnp.sum(chunk, axis=1)
        acc_m = jnp.maximum(acc_m, jnp.max(chunk, axis=1))
    # NOTE: 1/C is folded into the avg-channel weights in the wrapper, so the
    # raw channel sum acc_s is used directly (no extra (H,W)-sized divide).

    # ---- hoisted horizontal taps: 7 lane rolls + x-masks per channel ----
    # tap offset dx = kw - PAD; out[p] needs f[p + dx] => roll by (PAD - kw).
    hs_a = []
    hs_m = []
    for kw in range(KSIZE):
        sh = (PAD - kw) % HW
        src_a = pltpu.roll(acc_s, sh, axis=1) if sh else acc_s
        src_m = pltpu.roll(acc_m, sh, axis=1) if sh else acc_m
        xm = xm_ref[kw:kw + 1, :]                           # (1, HW), broadcasts
        hs_a.append(src_a * xm)
        hs_m.append(src_m * xm)

    # ---- vertical taps: one roll per kh; independent accumulator chains ----
    acc0 = jnp.full((G, HW), b_ref[0], dtype=jnp.float32)
    acc1 = jnp.zeros((G, HW), dtype=jnp.float32)
    accs = [acc0, acc1]
    for kh in range(KSIZE):
        # Two independent FMA chains (avg / max) -> co-issue on the VPU.
        row_a = hs_a[0] * w_ref[kh * KSIZE]
        row_m = hs_m[0] * w_ref[KSIZE * KSIZE + kh * KSIZE]
        for kw in range(1, KSIZE):
            row_a = row_a + hs_a[kw] * w_ref[kh * KSIZE + kw]
            row_m = row_m + hs_m[kw] * w_ref[KSIZE * KSIZE + kh * KSIZE + kw]
        term = row_a + row_m
        shv = ((PAD - kh) * W) % HW                          # dy = kh - PAD
        if shv:
            term = pltpu.roll(term, shv, axis=1)
        accs[kh % 2] = accs[kh % 2] + term * ym_ref[kh:kh + 1, :]

    o_ref[...] = jax.nn.sigmoid(accs[0] + accs[1]).astype(o_ref.dtype)


@jax.jit
def spatial_attention(x, weight, bias):
    """x: (B, C, H, W); weight: (1, 2, 7, 7); bias: (1,). Returns (B, 1, H, W)."""
    B, C, H, W = x.shape
    HW = H * W

    # Lane-dense view of x; free for contiguous NCHW. Keep the native dtype in
    # HBM (bf16 stays bf16); the kernel upcasts per chunk and accumulates f32.
    x_flat = x.reshape(B, C, HW)

    # Fold 1/C into the avg-channel weights (kernel consumes the channel SUM).
    w_avg = (weight[0, 0].astype(jnp.float32) / C).reshape(-1)
    w_max = weight[0, 1].astype(jnp.float32).reshape(-1)
    w_flat = jnp.concatenate([w_avg, w_max])                  # (2*49,)
    b_flat = bias.reshape(-1).astype(jnp.float32)             # (1,)

    # Per-tap boundary masks for the conv in the flat (H*W,) layout.
    idx = jnp.arange(HW, dtype=jnp.int32)
    cols = idx % W
    rows = idx // W
    xm = jnp.stack([((cols + (kw - PAD)) >= 0) & ((cols + (kw - PAD)) < W)
                    for kw in range(KSIZE)]).astype(jnp.float32)   # (7, HW)
    ym = jnp.stack([((rows + (kh - PAD)) >= 0) & ((rows + (kh - PAD)) < H)
                    for kh in range(KSIZE)]).astype(jnp.float32)   # (7, HW)

    # Batch-group size: as many batch items per grid step as fit ~4 MiB per
    # in-flight input buffer (double-buffered), so it stays well under the
    # default scoped-VMEM limit on all of v5e/v6e/v7x.
    # TODO(synk): for very large C*H*W (one batch item over budget, esp. on
    # v7x's 64 MiB VMEM) add a C grid axis ('arbitrary', last) with running
    # sum/max accumulators in VMEM scratch instead of shrinking G.
    bytes_per_item = C * HW * x.dtype.itemsize
    G = max(1, min(B, (4 * 1024 * 1024) // max(1, bytes_per_item)))
    while B % G:
        G -= 1

    kernel = functools.partial(_spatial_attn_kernel, G=G, C=C, H=H, W=W)

    out_flat = pl.pallas_call(
        kernel,
        out_shape=jax.ShapeDtypeStruct((B, HW), x.dtype),
        grid=(B // G,),
        in_specs=[
            pl.BlockSpec(memory_space=pltpu.MemorySpace.SMEM),    # conv weights
            pl.BlockSpec(memory_space=pltpu.MemorySpace.SMEM),    # conv bias
            pl.BlockSpec((KSIZE, HW), lambda i: (0, 0)),          # x-masks
            pl.BlockSpec((KSIZE, HW), lambda i: (0, 0)),          # y-masks
            pl.BlockSpec((G, C, HW), lambda i: (i, 0, 0)),        # x, lane-dense
        ],
        out_specs=pl.BlockSpec((G, HW), lambda i: (i, 0)),
        compiler_params=pltpu.CompilerParams(
            dimension_semantics=("parallel",),
            vmem_limit_bytes=32 * 1024 * 1024),
    )(w_flat, b_flat, xm, ym, x_flat)

    return out_flat.reshape(B, 1, H, W)


def _reference(x, weight, bias):
    # Pure-JAX reference mirroring the PyTorch forward (chunking is identity).
    avg = jnp.mean(x, axis=1, keepdims=True)
    mx = jnp.max(x, axis=1, keepdims=True)
    xc = jnp.concatenate([avg, mx], axis=1)
    out = lax.conv_general_dilated(
        xc, weight, window_strides=(1, 1),
        padding=[(PAD, PAD), (PAD, PAD)],
        dimension_numbers=("NCHW", "OIHW", "NCHW"),
    ) + bias.reshape(1, 1, 1, 1)
    return jax.nn.sigmoid(out)


if __name__ == "__main__":
    key = jax.random.PRNGKey(0)
    kx, kwt, kb = jax.random.split(key, 3)

    B, C, H, W = 2, 4, 16, 16
    x = jax.random.normal(kx, (B, C, H, W), dtype=jnp.float32)

    # Deterministic synthetic Conv2d(2, 1, kernel_size=7) parameters.
    fan_in = 2 * KSIZE * KSIZE
    bound = 1.0 / (fan_in ** 0.5)
    weight = jax.random.uniform(kwt, (1, 2, KSIZE, KSIZE),
                                minval=-bound, maxval=bound, dtype=jnp.float32)
    bias = jax.random.uniform(kb, (1,), minval=-bound, maxval=bound,
                              dtype=jnp.float32)

    out = spatial_attention(x, weight, bias)
    out = jax.block_until_ready(out)

    ref = _reference(x, weight, bias)
    assert out.shape == (B, 1, H, W), out.shape
    assert jnp.allclose(out, ref, atol=1e-5, rtol=1e-5), \
        float(jnp.max(jnp.abs(out - ref)))

    print("KERNEL_OK")
</pallas_src>

<mosaic_0001>
module attributes {stable_mosaic.version = 11 : i64} {
  func.func @_spatial_attn_kernel(%arg0: i32, %arg1: memref<98xf32, #tpu.memory_space<smem>>, %arg2: memref<1xf32, #tpu.memory_space<smem>>, %arg3: memref<7x256xf32, #tpu.memory_space<vmem>>, %arg4: memref<7x256xf32, #tpu.memory_space<vmem>>, %arg5: memref<2x4x256xf32, #tpu.memory_space<vmem>>, %arg6: memref<2x256xf32, #tpu.memory_space<vmem>>) attributes {dimension_semantics = [#tpu.dimension_semantics<parallel>], iteration_bounds = array<i64: 1>, scalar_prefetch = 0 : i64, scratch_operands = 0 : i64, tpu.core_type = #tpu.core_type<tc>, window_params = [{transform_indices = @transform_0, window_bounds = array<i64: 98>}, {transform_indices = @transform_1, window_bounds = array<i64: 1>}, {pipeline_mode = #tpu.pipeline_mode<synchronous>, transform_indices = @transform_2, window_bounds = array<i64: 7, 256>}, {pipeline_mode = #tpu.pipeline_mode<synchronous>, transform_indices = @transform_3, window_bounds = array<i64: 7, 256>}, {transform_indices = @transform_4, window_bounds = array<i64: 2, 4, 256>}, {transform_indices = @transform_5, window_bounds = array<i64: 2, 256>}]} {
    %c0 = arith.constant 0 : index
    %c0_0 = arith.constant 0 : index
    %c0_1 = arith.constant 0 : index
    %0 = vector.load %arg5[%c0, %c0_0, %c0_1] : memref<2x4x256xf32, #tpu.memory_space<vmem>>, vector<2x4x256xf32>
    %cst = arith.constant dense<0.000000e+00> : vector<2x256xf32>
    %1 = vector.multi_reduction <add>, %0, %cst [1] : vector<2x4x256xf32> to vector<2x256xf32>
    %cst_2 = arith.constant dense<0xFF800000> : vector<2x256xf32>
    %2 = vector.multi_reduction <maximumf>, %0, %cst_2 [1] : vector<2x4x256xf32> to vector<2x256xf32>
    %c3_i32 = arith.constant 3 : i32
    %3 = tpu.dynamic_rotate %1 by %c3_i32 dim 1 : vector<2x256xf32>, i32 -> vector<2x256xf32>
    %c3_i32_3 = arith.constant 3 : i32
    %4 = tpu.dynamic_rotate %2 by %c3_i32_3 dim 1 : vector<2x256xf32>, i32 -> vector<2x256xf32>
    %c0_4 = arith.constant 0 : index
    %c0_5 = arith.constant 0 : index
    %5 = vector.load %arg3[%c0_4, %c0_5] : memref<7x256xf32, #tpu.memory_space<vmem>>, vector<1x256xf32>
    %6 = vector.broadcast %5 : vector<1x256xf32> to vector<2x256xf32>
    %7 = arith.mulf %3, %6 : vector<2x256xf32>
    %8 = vector.broadcast %5 : vector<1x256xf32> to vector<2x256xf32>
    %9 = arith.mulf %4, %8 : vector<2x256xf32>
    %c2_i32 = arith.constant 2 : i32
    %10 = tpu.dynamic_rotate %1 by %c2_i32 dim 1 : vector<2x256xf32>, i32 -> vector<2x256xf32>
    %c2_i32_6 = arith.constant 2 : i32
    %11 = tpu.dynamic_rotate %2 by %c2_i32_6 dim 1 : vector<2x256xf32>, i32 -> vector<2x256xf32>
    %c1 = arith.constant 1 : index
    %c0_7 = arith.constant 0 : index
    %12 = vector.load %arg3[%c1, %c0_7] : memref<7x256xf32, #tpu.memory_space<vmem>>, vector<1x256xf32>
    %13 = vector.broadcast %12 : vector<1x256xf32> to vector<2x256xf32>
    %14 = arith.mulf %10, %13 : vector<2x256xf32>
    %15 = vector.broadcast %12 : vector<1x256xf32> to vector<2x256xf32>
    %16 = arith.mulf %11, %15 : vector<2x256xf32>
    %c1_i32 = arith.constant 1 : i32
    %17 = tpu.dynamic_rotate %1 by %c1_i32 dim 1 : vector<2x256xf32>, i32 -> vector<2x256xf32>
    %c1_i32_8 = arith.constant 1 : i32
    %18 = tpu.dynamic_rotate %2 by %c1_i32_8 dim 1 : vector<2x256xf32>, i32 -> vector<2x256xf32>
    %c2 = arith.constant 2 : index
    %c0_9 = arith.constant 0 : index
    %19 = vector.load %arg3[%c2, %c0_9] : memref<7x256xf32, #tpu.memory_space<vmem>>, vector<1x256xf32>
    %20 = vector.broadcast %19 : vector<1x256xf32> to vector<2x256xf32>
    %21 = arith.mulf %17, %20 : vector<2x256xf32>
    %22 = vector.broadcast %19 : vector<1x256xf32> to vector<2x256xf32>
    %23 = arith.mulf %18, %22 : vector<2x256xf32>
    %c3 = arith.constant 3 : index
    %c0_10 = arith.constant 0 : index
    %24 = vector.load %arg3[%c3, %c0_10] : memref<7x256xf32, #tpu.memory_space<vmem>>, vector<1x256xf32>
    %25 = vector.broadcast %24 : vector<1x256xf32> to vector<2x256xf32>
    %26 = arith.mulf %1, %25 : vector<2x256xf32>
    %27 = vector.broadcast %24 : vector<1x256xf32> to vector<2x256xf32>
    %28 = arith.mulf %2, %27 : vector<2x256xf32>
    %c255_i32 = arith.constant 255 : i32
    %29 = tpu.dynamic_rotate %1 by %c255_i32 dim 1 : vector<2x256xf32>, i32 -> vector<2x256xf32>
    %c255_i32_11 = arith.constant 255 : i32
    %30 = tpu.dynamic_rotate %2 by %c255_i32_11 dim 1 : vector<2x256xf32>, i32 -> vector<2x256xf32>
    %c4 = arith.constant 4 : index
    %c0_12 = arith.constant 0 : index
    %31 = vector.load %arg3[%c4, %c0_12] : memref<7x256xf32, #tpu.memory_space<vmem>>, vector<1x256xf32>
    %32 = vector.broadcast %31 : vector<1x256xf32> to vector<2x256xf32>
    %33 = arith.mulf %29, %32 : vector<2x256xf32>
    %34 = vector.broadcast %31 : vector<1x256xf32> to vector<2x256xf32>
    %35 = arith.mulf %30, %34 : vector<2x256xf32>
    %c254_i32 = arith.constant 254 : i32
    %36 = tpu.dynamic_rotate %1 by %c254_i32 dim 1 : vector<2x256xf32>, i32 -> vector<2x256xf32>
    %c254_i32_13 = arith.constant 254 : i32
    %37 = tpu.dynamic_rotate %2 by %c254_i32_13 dim 1 : vector<2x256xf32>, i32 -> vector<2x256xf32>
    %c5 = arith.constant 5 : index
    %c0_14 = arith.constant 0 : index
    %38 = vector.load %arg3[%c5, %c0_14] : memref<7x256xf32, #tpu.memory_space<vmem>>, vector<1x256xf32>
    %39 = vector.broadcast %38 : vector<1x256xf32> to vector<2x256xf32>
    %40 = arith.mulf %36, %39 : vector<2x256xf32>
    %41 = vector.broadcast %38 : vector<1x256xf32> to vector<2x256xf32>
    %42 = arith.mulf %37, %41 : vector<2x256xf32>
    %c253_i32 = arith.constant 253 : i32
    %43 = tpu.dynamic_rotate %1 by %c253_i32 dim 1 : vector<2x256xf32>, i32 -> vector<2x256xf32>
    %c253_i32_15 = arith.constant 253 : i32
    %44 = tpu.dynamic_rotate %2 by %c253_i32_15 dim 1 : vector<2x256xf32>, i32 -> vector<2x256xf32>
    %c6 = arith.constant 6 : index
    %c0_16 = arith.constant 0 : index
    %45 = vector.load %arg3[%c6, %c0_16] : memref<7x256xf32, #tpu.memory_space<vmem>>, vector<1x256xf32>
    %46 = vector.broadcast %45 : vector<1x256xf32> to vector<2x256xf32>
    %47 = arith.mulf %43, %46 : vector<2x256xf32>
    %48 = vector.broadcast %45 : vector<1x256xf32> to vector<2x256xf32>
    %49 = arith.mulf %44, %48 : vector<2x256xf32>
    %c0_17 = arith.constant 0 : index
    %50 = memref.load %arg2[%c0_17] : memref<1xf32, #tpu.memory_space<smem>>
    %51 = vector.broadcast %50 : f32 to vector<2x256xf32>
    %cst_18 = arith.constant 0.000000e+00 : f32
    %52 = vector.broadcast %cst_18 : f32 to vector<2x256xf32>
    %c0_19 = arith.constant 0 : index
    %53 = memref.load %arg1[%c0_19] : memref<98xf32, #tpu.memory_space<smem>>
    %54 = vector.broadcast %53 : f32 to vector<2x256xf32>
    %55 = arith.mulf %7, %54 : vector<2x256xf32>
    %c49 = arith.constant 49 : index
    %56 = memref.load %arg1[%c49] : memref<98xf32, #tpu.memory_space<smem>>
    %57 = vector.broadcast %56 : f32 to vector<2x256xf32>
    %58 = arith.mulf %9, %57 : vector<2x256xf32>
    %c1_20 = arith.constant 1 : index
    %59 = memref.load %arg1[%c1_20] : memref<98xf32, #tpu.memory_space<smem>>
    %60 = vector.broadcast %59 : f32 to vector<2x256xf32>
    %61 = arith.mulf %14, %60 : vector<2x256xf32>
    %62 = arith.addf %55, %61 : vector<2x256xf32>
    %c50 = arith.constant 50 : index
    %63 = memref.load %arg1[%c50] : memref<98xf32, #tpu.memory_space<smem>>
    %64 = vector.broadcast %63 : f32 to vector<2x256xf32>
    %65 = arith.mulf %16, %64 : vector<2x256xf32>
    %66 = arith.addf %58, %65 : vector<2x256xf32>
    %c2_21 = arith.constant 2 : index
    %67 = memref.load %arg1[%c2_21] : memref<98xf32, #tpu.memory_space<smem>>
    %68 = vector.broadcast %67 : f32 to vector<2x256xf32>
    %69 = arith.mulf %21, %68 : vector<2x256xf32>
    %70 = arith.addf %62, %69 : vector<2x256xf32>
    %c51 = arith.constant 51 : index
    %71 = memref.load %arg1[%c51] : memref<98xf32, #tpu.memory_space<smem>>
    %72 = vector.broadcast %71 : f32 to vector<2x256xf32>
    %73 = arith.mulf %23, %72 : vector<2x256xf32>
    %74 = arith.addf %66, %73 : vector<2x256xf32>
    %c3_22 = arith.constant 3 : index
    %75 = memref.load %arg1[%c3_22] : memref<98xf32, #tpu.memory_space<smem>>
    %76 = vector.broadcast %75 : f32 to vector<2x256xf32>
    %77 = arith.mulf %26, %76 : vector<2x256xf32>
    %78 = arith.addf %70, %77 : vector<2x256xf32>
    %c52 = arith.constant 52 : index
    %79 = memref.load %arg1[%c52] : memref<98xf32, #tpu.memory_space<smem>>
    %80 = vector.broadcast %79 : f32 to vector<2x256xf32>
    %81 = arith.mulf %28, %80 : vector<2x256xf32>
    %82 = arith.addf %74, %81 : vector<2x256xf32>
    %c4_23 = arith.constant 4 : index
    %83 = memref.load %arg1[%c4_23] : memref<98xf32, #tpu.memory_space<smem>>
    %84 = vector.broadcast %83 : f32 to vector<2x256xf32>
    %85 = arith.mulf %33, %84 : vector<2x256xf32>
    %86 = arith.addf %78, %85 : vector<2x256xf32>
    %c53 = arith.constant 53 : index
    %87 = memref.load %arg1[%c53] : memref<98xf32, #tpu.memory_space<smem>>
    %88 = vector.broadcast %87 : f32 to vector<2x256xf32>
    %89 = arith.mulf %35, %88 : vector<2x256xf32>
    %90 = arith.addf %82, %89 : vector<2x256xf32>
    %c5_24 = arith.constant 5 : index
    %91 = memref.load %arg1[%c5_24] : memref<98xf32, #tpu.memory_space<smem>>
    %92 = vector.broadcast %91 : f32 to vector<2x256xf32>
    %93 = arith.mulf %40, %92 : vector<2x256xf32>
    %94 = arith.addf %86, %93 : vector<2x256xf32>
    %c54 = arith.constant 54 : index
    %95 = memref.load %arg1[%c54] : memref<98xf32, #tpu.memory_space<smem>>
    %96 = vector.broadcast %95 : f32 to vector<2x256xf32>
    %97 = arith.mulf %42, %96 : vector<2x256xf32>
    %98 = arith.addf %90, %97 : vector<2x256xf32>
    %c6_25 = arith.constant 6 : index
    %99 = memref.load %arg1[%c6_25] : memref<98xf32, #tpu.memory_space<smem>>
    %100 = vector.broadcast %99 : f32 to vector<2x256xf32>
    %101 = arith.mulf %47, %100 : vector<2x256xf32>
    %102 = arith.addf %94, %101 : vector<2x256xf32>
    %c55 = arith.constant 55 : index
    %103 = memref.load %arg1[%c55] : memref<98xf32, #tpu.memory_space<smem>>
    %104 = vector.broadcast %103 : f32 to vector<2x256xf32>
    %105 = arith.mulf %49, %104 : vector<2x256xf32>
    %106 = arith.addf %98, %105 : vector<2x256xf32>
    %107 = arith.addf %102, %106 : vector<2x256xf32>
    %c48_i32 = arith.constant 48 : i32
    %108 = tpu.dynamic_rotate %107 by %c48_i32 dim 1 : vector<2x256xf32>, i32 -> vector<2x256xf32>
    %c0_26 = arith.constant 0 : index
    %c0_27 = arith.constant 0 : index
    %109 = vector.load %arg4[%c0_26, %c0_27] : memref<7x256xf32, #tpu.memory_space<vmem>>, vector<1x256xf32>
    %110 = vector.broadcast %109 : vector<1x256xf32> to vector<2x256xf32>
    %111 = arith.mulf %108, %110 : vector<2x256xf32>
    %112 = arith.addf %51, %111 : vector<2x256xf32>
    %c7 = arith.constant 7 : index
    %113 = memref.load %arg1[%c7] : memref<98xf32, #tpu.memory_space<smem>>
    %114 = vector.broadcast %113 : f32 to vector<2x256xf32>
    %115 = arith.mulf %7, %114 : vector<2x256xf32>
    %c56 = arith.constant 56 : index
    %116 = memref.load %arg1[%c56] : memref<98xf32, #tpu.memory_space<smem>>
    %117 = vector.broadcast %116 : f32 to vector<2x256xf32>
    %118 = arith.mulf %9, %117 : vector<2x256xf32>
    %c8 = arith.constant 8 : index
    %119 = memref.load %arg1[%c8] : memref<98xf32, #tpu.memory_space<smem>>
    %120 = vector.broadcast %119 : f32 to vector<2x256xf32>
    %121 = arith.mulf %14, %120 : vector<2x256xf32>
    %122 = arith.addf %115, %121 : vector<2x256xf32>
    %c57 = arith.constant 57 : index
    %123 = memref.load %arg1[%c57] : memref<98xf32, #tpu.memory_space<smem>>
    %124 = vector.broadcast %123 : f32 to vector<2x256xf32>
    %125 = arith.mulf %16, %124 : vector<2x256xf32>
    %126 = arith.addf %118, %125 : vector<2x256xf32>
    %c9 = arith.constant 9 : index
    %127 = memref.load %arg1[%c9] : memref<98xf32, #tpu.memory_space<smem>>
    %128 = vector.broadcast %127 : f32 to vector<2x256xf32>
    %129 = arith.mulf %21, %128 : vector<2x256xf32>
    %130 = arith.addf %122, %129 : vector<2x256xf32>
    %c58 = arith.constant 58 : index
    %131 = memref.load %arg1[%c58] : memref<98xf32, #tpu.memory_space<smem>>
    %132 = vector.broadcast %131 : f32 to vector<2x256xf32>
    %133 = arith.mulf %23, %132 : vector<2x256xf32>
    %134 = arith.addf %126, %133 : vector<2x256xf32>
    %c10 = arith.constant 10 : index
    %135 = memref.load %arg1[%c10] : memref<98xf32, #tpu.memory_space<smem>>
    %136 = vector.broadcast %135 : f32 to vector<2x256xf32>
    %137 = arith.mulf %26, %136 : vector<2x256xf32>
    %138 = arith.addf %130, %137 : vector<2x256xf32>
    %c59 = arith.constant 59 : index
    %139 = memref.load %arg1[%c59] : memref<98xf32, #tpu.memory_space<smem>>
    %140 = vector.broadcast %139 : f32 to vector<2x256xf32>
    %141 = arith.mulf %28, %140 : vector<2x256xf32>
    %142 = arith.addf %134, %141 : vector<2x256xf32>
    %c11 = arith.constant 11 : index
    %143 = memref.load %arg1[%c11] : memref<98xf32, #tpu.memory_space<smem>>
    %144 = vector.broadcast %143 : f32 to vector<2x256xf32>
    %145 = arith.mulf %33, %144 : vector<2x256xf32>
    %146 = arith.addf %138, %145 : vector<2x256xf32>
    %c60 = arith.constant 60 : index
    %147 = memref.load %arg1[%c60] : memref<98xf32, #tpu.memory_space<smem>>
    %148 = vector.broadcast %147 : f32 to vector<2x256xf32>
    %149 = arith.mulf %35, %148 : vector<2x256xf32>
    %150 = arith.addf %142, %149 : vector<2x256xf32>
    %c12 = arith.constant 12 : index
    %151 = memref.load %arg1[%c12] : memref<98xf32, #tpu.memory_space<smem>>
    %152 = vector.broadcast %151 : f32 to vector<2x256xf32>
    %153 = arith.mulf %40, %152 : vector<2x256xf32>
    %154 = arith.addf %146, %153 : vector<2x256xf32>
    %c61 = arith.constant 61 : index
    %155 = memref.load %arg1[%c61] : memref<98xf32, #tpu.memory_space<smem>>
    %156 = vector.broadcast %155 : f32 to vector<2x256xf32>
    %157 = arith.mulf %42, %156 : vector<2x256xf32>
    %158 = arith.addf %150, %157 : vector<2x256xf32>
    %c13 = arith.constant 13 : index
    %159 = memref.load %arg1[%c13] : memref<98xf32, #tpu.memory_space<smem>>
    %160 = vector.broadcast %159 : f32 to vector<2x256xf32>
    %161 = arith.mulf %47, %160 : vector<2x256xf32>
    %162 = arith.addf %154, %161 : vector<2x256xf32>
    %c62 = arith.constant 62 : index
    %163 = memref.load %arg1[%c62] : memref<98xf32, #tpu.memory_space<smem>>
    %164 = vector.broadcast %163 : f32 to vector<2x256xf32>
    %165 = arith.mulf %49, %164 : vector<2x256xf32>
    %166 = arith.addf %158, %165 : vector<2x256xf32>
    %167 = arith.addf %162, %166 : vector<2x256xf32>
    %c32_i32 = arith.constant 32 : i32
    %168 = tpu.dynamic_rotate %167 by %c32_i32 dim 1 : vector<2x256xf32>, i32 -> vector<2x256xf32>
    %c1_28 = arith.constant 1 : index
    %c0_29 = arith.constant 0 : index
    %169 = vector.load %arg4[%c1_28, %c0_29] : memref<7x256xf32, #tpu.memory_space<vmem>>, vector<1x256xf32>
    %170 = vector.broadcast %169 : vector<1x256xf32> to vector<2x256xf32>
    %171 = arith.mulf %168, %170 : vector<2x256xf32>
    %172 = arith.addf %52, %171 : vector<2x256xf32>
    %c14 = arith.constant 14 : index
    %173 = memref.load %arg1[%c14] : memref<98xf32, #tpu.memory_space<smem>>
    %174 = vector.broadcast %173 : f32 to vector<2x256xf32>
    %175 = arith.mulf %7, %174 : vector<2x256xf32>
    %c63 = arith.constant 63 : index
    %176 = memref.load %arg1[%c63] : memref<98xf32, #tpu.memory_space<smem>>
    %177 = vector.broadcast %176 : f32 to vector<2x256xf32>
    %178 = arith.mulf %9, %177 : vector<2x256xf32>
    %c15 = arith.constant 15 : index
    %179 = memref.load %arg1[%c15] : memref<98xf32, #tpu.memory_space<smem>>
    %180 = vector.broadcast %179 : f32 to vector<2x256xf32>
    %181 = arith.mulf %14, %180 : vector<2x256xf32>
    %182 = arith.addf %175, %181 : vector<2x256xf32>
    %c64 = arith.constant 64 : index
    %183 = memref.load %arg1[%c64] : memref<98xf32, #tpu.memory_space<smem>>
    %184 = vector.broadcast %183 : f32 to vector<2x256xf32>
    %185 = arith.mulf %16, %184 : vector<2x256xf32>
    %186 = arith.addf %178, %185 : vector<2x256xf32>
    %c16 = arith.constant 16 : index
    %187 = memref.load %arg1[%c16] : memref<98xf32, #tpu.memory_space<smem>>
    %188 = vector.broadcast %187 : f32 to vector<2x256xf32>
    %189 = arith.mulf %21, %188 : vector<2x256xf32>
    %190 = arith.addf %182, %189 : vector<2x256xf32>
    %c65 = arith.constant 65 : index
    %191 = memref.load %arg1[%c65] : memref<98xf32, #tpu.memory_space<smem>>
    %192 = vector.broadcast %191 : f32 to vector<2x256xf32>
    %193 = arith.mulf %23, %192 : vector<2x256xf32>
    %194 = arith.addf %186, %193 : vector<2x256xf32>
    %c17 = arith.constant 17 : index
    %195 = memref.load %arg1[%c17] : memref<98xf32, #tpu.memory_space<smem>>
    %196 = vector.broadcast %195 : f32 to vector<2x256xf32>
    %197 = arith.mulf %26, %196 : vector<2x256xf32>
    %198 = arith.addf %190, %197 : vector<2x256xf32>
    %c66 = arith.constant 66 : index
    %199 = memref.load %arg1[%c66] : memref<98xf32, #tpu.memory_space<smem>>
    %200 = vector.broadcast %199 : f32 to vector<2x256xf32>
    %201 = arith.mulf %28, %200 : vector<2x256xf32>
    %202 = arith.addf %194, %201 : vector<2x256xf32>
    %c18 = arith.constant 18 : index
    %203 = memref.load %arg1[%c18] : memref<98xf32, #tpu.memory_space<smem>>
    %204 = vector.broadcast %203 : f32 to vector<2x256xf32>
    %205 = arith.mulf %33, %204 : vector<2x256xf32>
    %206 = arith.addf %198, %205 : vector<2x256xf32>
    %c67 = arith.constant 67 : index
    %207 = memref.load %arg1[%c67] : memref<98xf32, #tpu.memory_space<smem>>
    %208 = vector.broadcast %207 : f32 to vector<2x256xf32>
    %209 = arith.mulf %35, %208 : vector<2x256xf32>
    %210 = arith.addf %202, %209 : vector<2x256xf32>
    %c19 = arith.constant 19 : index
    %211 = memref.load %arg1[%c19] : memref<98xf32, #tpu.memory_space<smem>>
    %212 = vector.broadcast %211 : f32 to vector<2x256xf32>
    %213 = arith.mulf %40, %212 : vector<2x256xf32>
    %214 = arith.addf %206, %213 : vector<2x256xf32>
    %c68 = arith.constant 68 : index
    %215 = memref.load %arg1[%c68] : memref<98xf32, #tpu.memory_space<smem>>
    %216 = vector.broadcast %215 : f32 to vector<2x256xf32>
    %217 = arith.mulf %42, %216 : vector<2x256xf32>
    %218 = arith.addf %210, %217 : vector<2x256xf32>
    %c20 = arith.constant 20 : index
    %219 = memref.load %arg1[%c20] : memref<98xf32, #tpu.memory_space<smem>>
    %220 = vector.broadcast %219 : f32 to vector<2x256xf32>
    %221 = arith.mulf %47, %220 : vector<2x256xf32>
    %222 = arith.addf %214, %221 : vector<2x256xf32>
    %c69 = arith.constant 69 : index
    %223 = memref.load %arg1[%c69] : memref<98xf32, #tpu.memory_space<smem>>
    %224 = vector.broadcast %223 : f32 to vector<2x256xf32>
    %225 = arith.mulf %49, %224 : vector<2x256xf32>
    %226 = arith.addf %218, %225 : vector<2x256xf32>
    %227 = arith.addf %222, %226 : vector<2x256xf32>
    %c16_i32 = arith.constant 16 : i32
    %228 = tpu.dynamic_rotate %227 by %c16_i32 dim 1 : vector<2x256xf32>, i32 -> vector<2x256xf32>
    %c2_30 = arith.constant 2 : index
    %c0_31 = arith.constant 0 : index
    %229 = vector.load %arg4[%c2_30, %c0_31] : memref<7x256xf32, #tpu.memory_space<vmem>>, vector<1x256xf32>
    %230 = vector.broadcast %229 : vector<1x256xf32> to vector<2x256xf32>
    %231 = arith.mulf %228, %230 : vector<2x256xf32>
    %232 = arith.addf %112, %231 : vector<2x256xf32>
    %c21 = arith.constant 21 : index
    %233 = memref.load %arg1[%c21] : memref<98xf32, #tpu.memory_space<smem>>
    %234 = vector.broadcast %233 : f32 to vector<2x256xf32>
    %235 = arith.mulf %7, %234 : vector<2x256xf32>
    %c70 = arith.constant 70 : index
    %236 = memref.load %arg1[%c70] : memref<98xf32, #tpu.memory_space<smem>>
    %237 = vector.broadcast %236 : f32 to vector<2x256xf32>
    %238 = arith.mulf %9, %237 : vector<2x256xf32>
    %c22 = arith.constant 22 : index
    %239 = memref.load %arg1[%c22] : memref<98xf32, #tpu.memory_space<smem>>
    %240 = vector.broadcast %239 : f32 to vector<2x256xf32>
    %241 = arith.mulf %14, %240 : vector<2x256xf32>
    %242 = arith.addf %235, %241 : vector<2x256xf32>
    %c71 = arith.constant 71 : index
    %243 = memref.load %arg1[%c71] : memref<98xf32, #tpu.memory_space<smem>>
    %244 = vector.broadcast %243 : f32 to vector<2x256xf32>
    %245 = arith.mulf %16, %244 : vector<2x256xf32>
    %246 = arith.addf %238, %245 : vector<2x256xf32>
    %c23 = arith.constant 23 : index
    %247 = memref.load %arg1[%c23] : memref<98xf32, #tpu.memory_space<smem>>
    %248 = vector.broadcast %247 : f32 to vector<2x256xf32>
    %249 = arith.mulf %21, %248 : vector<2x256xf32>
    %250 = arith.addf %242, %249 : vector<2x256xf32>
    %c72 = arith.constant 72 : index
    %251 = memref.load %arg1[%c72] : memref<98xf32, #tpu.memory_space<smem>>
    %252 = vector.broadcast %251 : f32 to vector<2x256xf32>
    %253 = arith.mulf %23, %252 : vector<2x256xf32>
    %254 = arith.addf %246, %253 : vector<2x256xf32>
    %c24 = arith.constant 24 : index
    %255 = memref.load %arg1[%c24] : memref<98xf32, #tpu.memory_space<smem>>
    %256 = vector.broadcast %255 : f32 to vector<2x256xf32>
    %257 = arith.mulf %26, %256 : vector<2x256xf32>
    %258 = arith.addf %250, %257 : vector<2x256xf32>
    %c73 = arith.constant 73 : index
    %259 = memref.load %arg1[%c73] : memref<98xf32, #tpu.memory_space<smem>>
    %260 = vector.broadcast %259 : f32 to vector<2x256xf32>
    %261 = arith.mulf %28, %260 : vector<2x256xf32>
    %262 = arith.addf %254, %261 : vector<2x256xf32>
    %c25 = arith.constant 25 : index
    %263 = memref.load %arg1[%c25] : memref<98xf32, #tpu.memory_space<smem>>
    %264 = vector.broadcast %263 : f32 to vector<2x256xf32>
    %265 = arith.mulf %33, %264 : vector<2x256xf32>
    %266 = arith.addf %258, %265 : vector<2x256xf32>
    %c74 = arith.constant 74 : index
    %267 = memref.load %arg1[%c74] : memref<98xf32, #tpu.memory_space<smem>>
    %268 = vector.broadcast %267 : f32 to vector<2x256xf32>
    %269 = arith.mulf %35, %268 : vector<2x256xf32>
    %270 = arith.addf %262, %269 : vector<2x256xf32>
    %c26 = arith.constant 26 : index
    %271 = memref.load %arg1[%c26] : memref<98xf32, #tpu.memory_space<smem>>
    %272 = vector.broadcast %271 : f32 to vector<2x256xf32>
    %273 = arith.mulf %40, %272 : vector<2x256xf32>
    %274 = arith.addf %266, %273 : vector<2x256xf32>
    %c75 = arith.constant 75 : index
    %275 = memref.load %arg1[%c75] : memref<98xf32, #tpu.memory_space<smem>>
    %276 = vector.broadcast %275 : f32 to vector<2x256xf32>
    %277 = arith.mulf %42, %276 : vector<2x256xf32>
    %278 = arith.addf %270, %277 : vector<2x256xf32>
    %c27 = arith.constant 27 : index
    %279 = memref.load %arg1[%c27] : memref<98xf32, #tpu.memory_space<smem>>
    %280 = vector.broadcast %279 : f32 to vector<2x256xf32>
    %281 = arith.mulf %47, %280 : vector<2x256xf32>
    %282 = arith.addf %274, %281 : vector<2x256xf32>
    %c76 = arith.constant 76 : index
    %283 = memref.load %arg1[%c76] : memref<98xf32, #tpu.memory_space<smem>>
    %284 = vector.broadcast %283 : f32 to vector<2x256xf32>
    %285 = arith.mulf %49, %284 : vector<2x256xf32>
    %286 = arith.addf %278, %285 : vector<2x256xf32>
    %287 = arith.addf %282, %286 : vector<2x256xf32>
    %c3_32 = arith.constant 3 : index
    %c0_33 = arith.constant 0 : index
    %288 = vector.load %arg4[%c3_32, %c0_33] : memref<7x256xf32, #tpu.memory_space<vmem>>, vector<1x256xf32>
    %289 = vector.broadcast %288 : vector<1x256xf32> to vector<2x256xf32>
    %290 = arith.mulf %287, %289 : vector<2x256xf32>
    %291 = arith.addf %172, %290 : vector<2x256xf32>
    %c28 = arith.constant 28 : index
    %292 = memref.load %arg1[%c28] : memref<98xf32, #tpu.memory_space<smem>>
    %293 = vector.broadcast %292 : f32 to vector<2x256xf32>
    %294 = arith.mulf %7, %293 : vector<2x256xf32>
    %c77 = arith.constant 77 : index
    %295 = memref.load %arg1[%c77] : memref<98xf32, #tpu.memory_space<smem>>
    %296 = vector.broadcast %295 : f32 to vector<2x256xf32>
    %297 = arith.mulf %9, %296 : vector<2x256xf32>
    %c29 = arith.constant 29 : index
    %298 = memref.load %arg1[%c29] : memref<98xf32, #tpu.memory_space<smem>>
    %299 = vector.broadcast %298 : f32 to vector<2x256xf32>
    %300 = arith.mulf %14, %299 : vector<2x256xf32>
    %301 = arith.addf %294, %300 : vector<2x256xf32>
    %c78 = arith.constant 78 : index
    %302 = memref.load %arg1[%c78] : memref<98xf32, #tpu.memory_space<smem>>
    %303 = vector.broadcast %302 : f32 to vector<2x256xf32>
    %304 = arith.mulf %16, %303 : vector<2x256xf32>
    %305 = arith.addf %297, %304 : vector<2x256xf32>
    %c30 = arith.constant 30 : index
    %306 = memref.load %arg1[%c30] : memref<98xf32, #tpu.memory_space<smem>>
    %307 = vector.broadcast %306 : f32 to vector<2x256xf32>
    %308 = arith.mulf %21, %307 : vector<2x256xf32>
    %309 = arith.addf %301, %308 : vector<2x256xf32>
    %c79 = arith.constant 79 : index
    %310 = memref.load %arg1[%c79] : memref<98xf32, #tpu.memory_space<smem>>
    %311 = vector.broadcast %310 : f32 to vector<2x256xf32>
    %312 = arith.mulf %23, %311 : vector<2x256xf32>
    %313 = arith.addf %305, %312 : vector<2x256xf32>
    %c31 = arith.constant 31 : index
    %314 = memref.load %arg1[%c31] : memref<98xf32, #tpu.memory_space<smem>>
    %315 = vector.broadcast %314 : f32 to vector<2x256xf32>
    %316 = arith.mulf %26, %315 : vector<2x256xf32>
    %317 = arith.addf %309, %316 : vector<2x256xf32>
    %c80 = arith.constant 80 : index
    %318 = memref.load %arg1[%c80] : memref<98xf32, #tpu.memory_space<smem>>
    %319 = vector.broadcast %318 : f32 to vector<2x256xf32>
    %320 = arith.mulf %28, %319 : vector<2x256xf32>
    %321 = arith.addf %313, %320 : vector<2x256xf32>
    %c32 = arith.constant 32 : index
    %322 = memref.load %arg1[%c32] : memref<98xf32, #tpu.memory_space<smem>>
    %323 = vector.broadcast %322 : f32 to vector<2x256xf32>
    %324 = arith.mulf %33, %323 : vector<2x256xf32>
    %325 = arith.addf %317, %324 : vector<2x256xf32>
    %c81 = arith.constant 81 : index
    %326 = memref.load %arg1[%c81] : memref<98xf32, #tpu.memory_space<smem>>
    %327 = vector.broadcast %326 : f32 to vector<2x256xf32>
    %328 = arith.mulf %35, %327 : vector<2x256xf32>
    %329 = arith.addf %321, %328 : vector<2x256xf32>
    %c33 = arith.constant 33 : index
    %330 = memref.load %arg1[%c33] : memref<98xf32, #tpu.memory_space<smem>>
    %331 = vector.broadcast %330 : f32 to vector<2x256xf32>
    %332 = arith.mulf %40, %331 : vector<2x256xf32>
    %333 = arith.addf %325, %332 : vector<2x256xf32>
    %c82 = arith.constant 82 : index
    %334 = memref.load %arg1[%c82] : memref<98xf32, #tpu.memory_space<smem>>
    %335 = vector.broadcast %334 : f32 to vector<2x256xf32>
    %336 = arith.mulf %42, %335 : vector<2x256xf32>
    %337 = arith.addf %329, %336 : vector<2x256xf32>
    %c34 = arith.constant 34 : index
    %338 = memref.load %arg1[%c34] : memref<98xf32, #tpu.memory_space<smem>>
    %339 = vector.broadcast %338 : f32 to vector<2x256xf32>
    %340 = arith.mulf %47, %339 : vector<2x256xf32>
    %341 = arith.addf %333, %340 : vector<2x256xf32>
    %c83 = arith.constant 83 : index
    %342 = memref.load %arg1[%c83] : memref<98xf32, #tpu.memory_space<smem>>
    %343 = vector.broadcast %342 : f32 to vector<2x256xf32>
    %344 = arith.mulf %49, %343 : vector<2x256xf32>
    %345 = arith.addf %337, %344 : vector<2x256xf32>
    %346 = arith.addf %341, %345 : vector<2x256xf32>
    %c240_i32 = arith.constant 240 : i32
    %347 = tpu.dynamic_rotate %346 by %c240_i32 dim 1 : vector<2x256xf32>, i32 -> vector<2x256xf32>
    %c4_34 = arith.constant 4 : index
    %c0_35 = arith.constant 0 : index
    %348 = vector.load %arg4[%c4_34, %c0_35] : memref<7x256xf32, #tpu.memory_space<vmem>>, vector<1x256xf32>
    %349 = vector.broadcast %348 : vector<1x256xf32> to vector<2x256xf32>
    %350 = arith.mulf %347, %349 : vector<2x256xf32>
    %351 = arith.addf %232, %350 : vector<2x256xf32>
    %c35 = arith.constant 35 : index
    %352 = memref.load %arg1[%c35] : memref<98xf32, #tpu.memory_space<smem>>
    %353 = vector.broadcast %352 : f32 to vector<2x256xf32>
    %354 = arith.mulf %7, %353 : vector<2x256xf32>
    %c84 = arith.constant 84 : index
    %355 = memref.load %arg1[%c84] : memref<98xf32, #tpu.memory_space<smem>>
    %356 = vector.broadcast %355 : f32 to vector<2x256xf32>
    %357 = arith.mulf %9, %356 : vector<2x256xf32>
    %c36 = arith.constant 36 : index
    %358 = memref.load %arg1[%c36] : memref<98xf32, #tpu.memory_space<smem>>
    %359 = vector.broadcast %358 : f32 to vector<2x256xf32>
    %360 = arith.mulf %14, %359 : vector<2x256xf32>
    %361 = arith.addf %354, %360 : vector<2x256xf32>
    %c85 = arith.constant 85 : index
    %362 = memref.load %arg1[%c85] : memref<98xf32, #tpu.memory_space<smem>>
    %363 = vector.broadcast %362 : f32 to vector<2x256xf32>
    %364 = arith.mulf %16, %363 : vector<2x256xf32>
    %365 = arith.addf %357, %364 : vector<2x256xf32>
    %c37 = arith.constant 37 : index
    %366 = memref.load %arg1[%c37] : memref<98xf32, #tpu.memory_space<smem>>
    %367 = vector.broadcast %366 : f32 to vector<2x256xf32>
    %368 = arith.mulf %21, %367 : vector<2x256xf32>
    %369 = arith.addf %361, %368 : vector<2x256xf32>
    %c86 = arith.constant 86 : index
    %370 = memref.load %arg1[%c86] : memref<98xf32, #tpu.memory_space<smem>>
    %371 = vector.broadcast %370 : f32 to vector<2x256xf32>
    %372 = arith.mulf %23, %371 : vector<2x256xf32>
    %373 = arith.addf %365, %372 : vector<2x256xf32>
    %c38 = arith.constant 38 : index
    %374 = memref.load %arg1[%c38] : memref<98xf32, #tpu.memory_space<smem>>
    %375 = vector.broadcast %374 : f32 to vector<2x256xf32>
    %376 = arith.mulf %26, %375 : vector<2x256xf32>
    %377 = arith.addf %369, %376 : vector<2x256xf32>
    %c87 = arith.constant 87 : index
    %378 = memref.load %arg1[%c87] : memref<98xf32, #tpu.memory_space<smem>>
    %379 = vector.broadcast %378 : f32 to vector<2x256xf32>
    %380 = arith.mulf %28, %379 : vector<2x256xf32>
    %381 = arith.addf %373, %380 : vector<2x256xf32>
    %c39 = arith.constant 39 : index
    %382 = memref.load %arg1[%c39] : memref<98xf32, #tpu.memory_space<smem>>
    %383 = vector.broadcast %382 : f32 to vector<2x256xf32>
    %384 = arith.mulf %33, %383 : vector<2x256xf32>
    %385 = arith.addf %377, %384 : vector<2x256xf32>
    %c88 = arith.constant 88 : index
    %386 = memref.load %arg1[%c88] : memref<98xf32, #tpu.memory_space<smem>>
    %387 = vector.broadcast %386 : f32 to vector<2x256xf32>
    %388 = arith.mulf %35, %387 : vector<2x256xf32>
    %389 = arith.addf %381, %388 : vector<2x256xf32>
    %c40 = arith.constant 40 : index
    %390 = memref.load %arg1[%c40] : memref<98xf32, #tpu.memory_space<smem>>
    %391 = vector.broadcast %390 : f32 to vector<2x256xf32>
    %392 = arith.mulf %40, %391 : vector<2x256xf32>
    %393 = arith.addf %385, %392 : vector<2x256xf32>
    %c89 = arith.constant 89 : index
    %394 = memref.load %arg1[%c89] : memref<98xf32, #tpu.memory_space<smem>>
    %395 = vector.broadcast %394 : f32 to vector<2x256xf32>
    %396 = arith.mulf %42, %395 : vector<2x256xf32>
    %397 = arith.addf %389, %396 : vector<2x256xf32>
    %c41 = arith.constant 41 : index
    %398 = memref.load %arg1[%c41] : memref<98xf32, #tpu.memory_space<smem>>
    %399 = vector.broadcast %398 : f32 to vector<2x256xf32>
    %400 = arith.mulf %47, %399 : vector<2x256xf32>
    %401 = arith.addf %393, %400 : vector<2x256xf32>
    %c90 = arith.constant 90 : index
    %402 = memref.load %arg1[%c90] : memref<98xf32, #tpu.memory_space<smem>>
    %403 = vector.broadcast %402 : f32 to vector<2x256xf32>
    %404 = arith.mulf %49, %403 : vector<2x256xf32>
    %405 = arith.addf %397, %404 : vector<2x256xf32>
    %406 = arith.addf %401, %405 : vector<2x256xf32>
    %c224_i32 = arith.constant 224 : i32
    %407 = tpu.dynamic_rotate %406 by %c224_i32 dim 1 : vector<2x256xf32>, i32 -> vector<2x256xf32>
    %c5_36 = arith.constant 5 : index
    %c0_37 = arith.constant 0 : index
    %408 = vector.load %arg4[%c5_36, %c0_37] : memref<7x256xf32, #tpu.memory_space<vmem>>, vector<1x256xf32>
    %409 = vector.broadcast %408 : vector<1x256xf32> to vector<2x256xf32>
    %410 = arith.mulf %407, %409 : vector<2x256xf32>
    %411 = arith.addf %291, %410 : vector<2x256xf32>
    %c42 = arith.constant 42 : index
    %412 = memref.load %arg1[%c42] : memref<98xf32, #tpu.memory_space<smem>>
    %413 = vector.broadcast %412 : f32 to vector<2x256xf32>
    %414 = arith.mulf %7, %413 : vector<2x256xf32>
    %c91 = arith.constant 91 : index
    %415 = memref.load %arg1[%c91] : memref<98xf32, #tpu.memory_space<smem>>
    %416 = vector.broadcast %415 : f32 to vector<2x256xf32>
    %417 = arith.mulf %9, %416 : vector<2x256xf32>
    %c43 = arith.constant 43 : index
    %418 = memref.load %arg1[%c43] : memref<98xf32, #tpu.memory_space<smem>>
    %419 = vector.broadcast %418 : f32 to vector<2x256xf32>
    %420 = arith.mulf %14, %419 : vector<2x256xf32>
    %421 = arith.addf %414, %420 : vector<2x256xf32>
    %c92 = arith.constant 92 : index
    %422 = memref.load %arg1[%c92] : memref<98xf32, #tpu.memory_space<smem>>
    %423 = vector.broadcast %422 : f32 to vector<2x256xf32>
    %424 = arith.mulf %16, %423 : vector<2x256xf32>
    %425 = arith.addf %417, %424 : vector<2x256xf32>
    %c44 = arith.constant 44 : index
    %426 = memref.load %arg1[%c44] : memref<98xf32, #tpu.memory_space<smem>>
    %427 = vector.broadcast %426 : f32 to vector<2x256xf32>
    %428 = arith.mulf %21, %427 : vector<2x256xf32>
    %429 = arith.addf %421, %428 : vector<2x256xf32>
    %c93 = arith.constant 93 : index
    %430 = memref.load %arg1[%c93] : memref<98xf32, #tpu.memory_space<smem>>
    %431 = vector.broadcast %430 : f32 to vector<2x256xf32>
    %432 = arith.mulf %23, %431 : vector<2x256xf32>
    %433 = arith.addf %425, %432 : vector<2x256xf32>
    %c45 = arith.constant 45 : index
    %434 = memref.load %arg1[%c45] : memref<98xf32, #tpu.memory_space<smem>>
    %435 = vector.broadcast %434 : f32 to vector<2x256xf32>
    %436 = arith.mulf %26, %435 : vector<2x256xf32>
    %437 = arith.addf %429, %436 : vector<2x256xf32>
    %c94 = arith.constant 94 : index
    %438 = memref.load %arg1[%c94] : memref<98xf32, #tpu.memory_space<smem>>
    %439 = vector.broadcast %438 : f32 to vector<2x256xf32>
    %440 = arith.mulf %28, %439 : vector<2x256xf32>
    %441 = arith.addf %433, %440 : vector<2x256xf32>
    %c46 = arith.constant 46 : index
    %442 = memref.load %arg1[%c46] : memref<98xf32, #tpu.memory_space<smem>>
    %443 = vector.broadcast %442 : f32 to vector<2x256xf32>
    %444 = arith.mulf %33, %443 : vector<2x256xf32>
    %445 = arith.addf %437, %444 : vector<2x256xf32>
    %c95 = arith.constant 95 : index
    %446 = memref.load %arg1[%c95] : memref<98xf32, #tpu.memory_space<smem>>
    %447 = vector.broadcast %446 : f32 to vector<2x256xf32>
    %448 = arith.mulf %35, %447 : vector<2x256xf32>
    %449 = arith.addf %441, %448 : vector<2x256xf32>
    %c47 = arith.constant 47 : index
    %450 = memref.load %arg1[%c47] : memref<98xf32, #tpu.memory_space<smem>>
    %451 = vector.broadcast %450 : f32 to vector<2x256xf32>
    %452 = arith.mulf %40, %451 : vector<2x256xf32>
    %453 = arith.addf %445, %452 : vector<2x256xf32>
    %c96 = arith.constant 96 : index
    %454 = memref.load %arg1[%c96] : memref<98xf32, #tpu.memory_space<smem>>
    %455 = vector.broadcast %454 : f32 to vector<2x256xf32>
    %456 = arith.mulf %42, %455 : vector<2x256xf32>
    %457 = arith.addf %449, %456 : vector<2x256xf32>
    %c48 = arith.constant 48 : index
    %458 = memref.load %arg1[%c48] : memref<98xf32, #tpu.memory_space<smem>>
    %459 = vector.broadcast %458 : f32 to vector<2x256xf32>
    %460 = arith.mulf %47, %459 : vector<2x256xf32>
    %461 = arith.addf %453, %460 : vector<2x256xf32>
    %c97 = arith.constant 97 : index
    %462 = memref.load %arg1[%c97] : memref<98xf32, #tpu.memory_space<smem>>
    %463 = vector.broadcast %462 : f32 to vector<2x256xf32>
    %464 = arith.mulf %49, %463 : vector<2x256xf32>
    %465 = arith.addf %457, %464 : vector<2x256xf32>
    %466 = arith.addf %461, %465 : vector<2x256xf32>
    %c208_i32 = arith.constant 208 : i32
    %467 = tpu.dynamic_rotate %466 by %c208_i32 dim 1 : vector<2x256xf32>, i32 -> vector<2x256xf32>
    %c6_38 = arith.constant 6 : index
    %c0_39 = arith.constant 0 : index
    %468 = vector.load %arg4[%c6_38, %c0_39] : memref<7x256xf32, #tpu.memory_space<vmem>>, vector<1x256xf32>
    %469 = vector.broadcast %468 : vector<1x256xf32> to vector<2x256xf32>
    %470 = arith.mulf %467, %469 : vector<2x256xf32>
    %471 = arith.addf %351, %470 : vector<2x256xf32>
    %472 = arith.addf %471, %411 : vector<2x256xf32>
    %473 = arith.negf %472 : vector<2x256xf32>
    %474 = math.exp %473 : vector<2x256xf32>
    %cst_40 = arith.constant 1.000000e+00 : f32
    %475 = vector.broadcast %cst_40 : f32 to vector<2x256xf32>
    %476 = arith.addf %475, %474 : vector<2x256xf32>
    %477 = arith.divf %475, %476 : vector<2x256xf32>
    %c0_41 = arith.constant 0 : index
    %c0_42 = arith.constant 0 : index
    %478 = vector.load %arg6[%c0_41, %c0_42] : memref<2x256xf32, #tpu.memory_space<vmem>>, vector<2x256xf32>
    tpu.vector_store %arg6[%c0_41, %c0_42], %477 {strides = array<i32>} : memref<2x256xf32, #tpu.memory_space<vmem>>, vector<2x256xf32>,
    return
  }
  func.func @transform_0(%arg0: i32) -> i32 {
    %c0_i32 = arith.constant 0 : i32
    %c0_i32_0 = arith.constant 0 : i32
    return %c0_i32 : i32
  }
  func.func @transform_1(%arg0: i32) -> i32 {
    %c0_i32 = arith.constant 0 : i32
    %c0_i32_0 = arith.constant 0 : i32
    return %c0_i32 : i32
  }
  func.func @transform_2(%arg0: i32) -> (i32, i32) {
    %c0_i32 = arith.constant 0 : i32
    %c0_i32_0 = arith.constant 0 : i32
    %c0_i32_1 = arith.constant 0 : i32
    return %c0_i32, %c0_i32_0 : i32, i32
  }
  func.func @transform_3(%arg0: i32) -> (i32, i32) {
    %c0_i32 = arith.constant 0 : i32
    %c0_i32_0 = arith.constant 0 : i32
    %c0_i32_1 = arith.constant 0 : i32
    return %c0_i32, %c0_i32_0 : i32, i32
  }
  func.func @transform_4(%arg0: i32) -> (i32, i32, i32) {
    %c0_i32 = arith.constant 0 : i32
    %c0_i32_0 = arith.constant 0 : i32
    %c0_i32_1 = arith.constant 0 : i32
    return %arg0, %c0_i32, %c0_i32_0 : i32, i32, i32
  }
  func.func @transform_5(%arg0: i32) -> (i32, i32) {
    %c0_i32 = arith.constant 0 : i32
    %c0_i32_0 = arith.constant 0 : i32
    return %arg0, %c0_i32 : i32, i32
  }
}

</mosaic_0001>

<llo_original>
// kernel: spatial_attention.1
$region0: #{spatial_attention.1}
  #allocation0 [shape = 'u32[]', space=smem, size = 0x4, offset = 0x4, fixed_abs, tag = 'smem constant byte address 0x4 - core index']
  #allocation1 [shape = 'u32[144,128]{1,0:T(1,128)}', space=vmem, size = 0x12000, scoped, tag = 'internal scratch']
  #allocation2 [shape = 'f32[1]{0:T(128)S(6)}', space=smem, size = 0x200, scoped, tag = 'scoped memory for spatial_attention.1']
  %s0 = inlined_call_operand.vmem [shape: f32[98], index: 0, kind: input, shape index: {}]
  %s1 = inlined_call_operand.<no memory space> [shape: f32[1], index: 1, kind: input, shape index: {}]
  %s2 = inlined_call_operand.vmem [shape: f32[7,256], index: 2, kind: input, shape index: {}]
  %s3 = inlined_call_operand.vmem [shape: f32[7,256], index: 3, kind: input, shape index: {}]
  %s4 = inlined_call_operand.vmem [shape: f32[2,4,256], index: 4, kind: input, shape index: {}]
  %s5 = inlined_call_operand.vmem [shape: f32[2,256], index: 5, kind: output, shape index: {}]
  %s6 = sld [smem:[#allocation0]]
  $region34: #{spatial_attention.1} parent=0
    _
  %s8 = ssub.s32 1, %s6
  %s9 = scalar_select 0, %s8, %s6
  %10 = sst [smem:[#allocation2]] %s1
  $region1: #{spatial_attention.1} parent=0
    #allocation3 [shape = 'u8[512]{0}', space=smem, size = 0x200, scoped, tag = 'input window, operand 0, single buffered']
    #allocation4 [shape = 's32[1]{0}', space=sflag, size = 0x4, scoped, tag = 'scoped memory for spatial_attention.1']
    %11 = vsyncpa [#allocation4], 0
    // Predicated region
    $region2: #{spatial_attention.1} parent=1 // pred_check
      _
    $region3: #{spatial_attention.1} parent=1 // pred_check_branch
      %13 = sbr.rel (0) target = $region5
    $region4: #{spatial_attention.1} parent=1 // pred_region
      %s15 = ssub.s32 16, 16
      %16 = vsyncadd [#allocation4], %s15
      %s18 = sshll.u32 %s0, 4
      %s19 = int_to_ptr.vmem [resolvable:$true] %s18
      %21 = dma.vmem_to_smem %s19, 16, [#allocation3], [#allocation4]
    $region5: #{spatial_attention.1} parent=1 // pred_fallthru
      _
    // Predicated region
    $region6: #{spatial_attention.1} parent=1 // pred_check
      _
    $region7: #{spatial_attention.1} parent=1 // pred_check_branch
      %23 = sbr.rel (0) target = $region9
    $region8: #{spatial_attention.1} parent=1 // pred_region
      _
    $region9: #{spatial_attention.1} parent=1 // pred_fallthru
      _
    // Predicated region
    $region10: #{spatial_attention.1} parent=1 // pred_check
      _
    $region11: #{spatial_attention.1} parent=1 // pred_check_branch
      %25 = sbr.rel (0) target = $region13
    $region12: #{spatial_attention.1} parent=1 // pred_region
      _
    $region13: #{spatial_attention.1} parent=1 // pred_fallthru
      _
    // Predicated region
    $region14: #{spatial_attention.1} parent=1 // pred_check
      _
    $region15: #{spatial_attention.1} parent=1 // pred_check_branch
      %27 = sbr.rel (0) target = $region17
    $region16: #{spatial_attention.1} parent=1 // pred_region
      _
    $region17: #{spatial_attention.1} parent=1 // pred_fallthru
      _
    // Predicated region
    $region18: #{spatial_attention.1} parent=1 // pred_check
      _
    $region19: #{spatial_attention.1} parent=1 // pred_check_branch
      %29 = sbr.rel (0) target = $region21
    $region20: #{spatial_attention.1} parent=1 // pred_region
      _
    $region21: #{spatial_attention.1} parent=1 // pred_fallthru
      _
    // Predicated region
    $region22: #{spatial_attention.1} parent=1 // pred_check
      _
    $region23: #{spatial_attention.1} parent=1 // pred_check_branch
      %31 = sbr.rel (0) target = $region25
    $region24: #{spatial_attention.1} parent=1 // pred_region
      %32 = dma.done [#allocation4], 16
    $region25: #{spatial_attention.1} parent=1 // pred_fallthru
      _
    %33 = sfence
    %v34 = vld [vmem:[%s4] sm:$0xff]
    %v35 = vld [vmem:[%s4 + $0x8] sm:$0xff]
    %v38 = vcombine.high %v34, %v34
    %v39 = vcombine.high %v35, %v35
    %vm42 = vcmask 1043456
    %v43 = vsel %vm42, %v34, 0.0
    %v44 = vrot.slane %v43, 4
    %v45 = vadd.f32 %v43, %v44
    %v46 = vrot.slane %v45, 2
    %v47 = vadd.f32 %v45, %v46
    %v48 = vrot.slane %v47, 1
    %v49 = vadd.f32 %v47, %v48
    %v50 = vsel %vm42, %v38, 0.0
    %v51 = vrot.slane %v50, 4
    %v52 = vadd.f32 %v50, %v51
    %v53 = vrot.slane %v52, 2
    %v54 = vadd.f32 %v52, %v53
    %v55 = vrot.slane %v54, 1
    %v56 = vadd.f32 %v54, %v55
    %v57 = vsel %vm42, %v35, 0.0
    %v58 = vrot.slane %v57, 4
    %v59 = vadd.f32 %v57, %v58
    %v60 = vrot.slane %v59, 2
    %v61 = vadd.f32 %v59, %v60
    %v62 = vrot.slane %v61, 1
    %v63 = vadd.f32 %v61, %v62
    %v64 = vsel %vm42, %v39, 0.0
    %v65 = vrot.slane %v64, 4
    %v66 = vadd.f32 %v64, %v65
    %v67 = vrot.slane %v66, 2
    %v68 = vadd.f32 %v66, %v67
    %v69 = vrot.slane %v68, 1
    %v70 = vadd.f32 %v68, %v69
    %v71 = vsel %vm42, %v34, -inf
    %v72 = vrot.slane %v71, 4
    %v73 = vmax.f32 %v71, %v72
    %v74 = vrot.slane %v73, 2
    %v75 = vmax.f32 %v73, %v74
    %v76 = vrot.slane %v75, 1
    %v77 = vmax.f32 %v75, %v76
    %v78 = vsel %vm42, %v38, -inf
    %v79 = vrot.slane %v78, 4
    %v80 = vmax.f32 %v78, %v79
    %v81 = vrot.slane %v80, 2
    %v82 = vmax.f32 %v80, %v81
    %v83 = vrot.slane %v82, 1
    %v84 = vmax.f32 %v82, %v83
    %v85 = vsel %vm42, %v35, -inf
    %v86 = vrot.slane %v85, 4
    %v87 = vmax.f32 %v85, %v86
    %v88 = vrot.slane %v87, 2
    %v89 = vmax.f32 %v87, %v88
    %v90 = vrot.slane %v89, 1
    %v91 = vmax.f32 %v89, %v90
    %v92 = vsel %vm42, %v39, -inf
    %v93 = vrot.slane %v92, 4
    %v94 = vmax.f32 %v92, %v93
    %v95 = vrot.slane %v94, 2
    %v96 = vmax.f32 %v94, %v95
    %v97 = vrot.slane %v96, 1
    %v98 = vmax.f32 %v96, %v97
    %vm103 = vcmask 1041409
    %v104 = vsel %vm103, %v63, %v49
    %v105 = vsel %vm103, %v70, %v56
    %108 = vrot.lane.b32.xlu0 %v104, 3
    %v109 = vpop.permute.xlu0 %108
    %110 = vrot.lane.b32.xlu0 %v105, 3
    %v111 = vpop.permute.xlu0 %110
    %v112 = vlaneseq
    %v113 = vand.u32 %v112, 127
    %vm114 = vcmp.lt.s32.totalorder %v113, 3
    %v115 = vsel %vm114, %v109, %v111
    %v116 = vsel %vm114, %v111, %v109
    %v121 = vsel %vm103, %v91, %v77
    %v122 = vsel %vm103, %v98, %v84
    %125 = vrot.lane.b32.xlu0 %v121, 3
    %v126 = vpop.permute.xlu0 %125
    %127 = vrot.lane.b32.xlu0 %v122, 3
    %v128 = vpop.permute.xlu0 %127
    %v129 = vsel %vm114, %v126, %v128
    %v130 = vsel %vm114, %v128, %v126
    %v131 = vld [vmem:[%s2] ss:$8 sm:$0x3]
    %v133 = vlaneseq
    %v134 = vshrl.u32 %v133, 7
    %v135 = vsub.s32 0, %v134
    %v136 = vrot.slane %v131, %v135
    %v137 = vlaneseq
    %v138 = vshrl.u32 %v137, 7
    %v139 = vsub.s32 1, %v138
    %v140 = vrot.slane %v131, %v139
    %v143 = vmul.f32 %v116, %v136
    %v144 = vmul.f32 %v115, %v140
    %v145 = vmul.f32 %v130, %v136
    %v146 = vmul.f32 %v129, %v140
    %147 = vrot.lane.b32.xlu0 %v104, 2
    %v148 = vpop.permute.xlu0 %147
    %149 = vrot.lane.b32.xlu0 %v105, 2
    %v150 = vpop.permute.xlu0 %149
    %vm151 = vcmp.lt.s32.totalorder %v113, 2
    %v152 = vsel %vm151, %v148, %v150
    %v153 = vsel %vm151, %v150, %v148
    %154 = vrot.lane.b32.xlu0 %v121, 2
    %v155 = vpop.permute.xlu0 %154
    %156 = vrot.lane.b32.xlu0 %v122, 2
    %v157 = vpop.permute.xlu0 %156
    %v158 = vsel %vm151, %v155, %v157
    %v159 = vsel %vm151, %v157, %v155
    %s160 = scalar_lea.vmem %s2, 1
    %v161 = vld [vmem:[%s160] ss:$8 sm:$0x3]
    %v163 = vlaneseq
    %v164 = vshrl.u32 %v163, 7
    %v165 = vsub.s32 0, %v164
    %v166 = vrot.slane %v161, %v165
    %v167 = vlaneseq
    %v168 = vshrl.u32 %v167, 7
    %v169 = vsub.s32 1, %v168
    %v170 = vrot.slane %v161, %v169
    %v173 = vmul.f32 %v153, %v166
    %v174 = vmul.f32 %v152, %v170
    %v175 = vmul.f32 %v159, %v166
    %v176 = vmul.f32 %v158, %v170
    %177 = vrot.lane.b32.xlu0 %v104, 1
    %v178 = vpop.permute.xlu0 %177
    %179 = vrot.lane.b32.xlu0 %v105, 1
    %v180 = vpop.permute.xlu0 %179
    %vm181 = vcmp.lt.s32.totalorder %v113, 1
    %v182 = vsel %vm181, %v178, %v180
    %v183 = vsel %vm181, %v180, %v178
    %184 = vrot.lane.b32.xlu0 %v121, 1
    %v185 = vpop.permute.xlu0 %184
    %186 = vrot.lane.b32.xlu0 %v122, 1
    %v187 = vpop.permute.xlu0 %186
    %v188 = vsel %vm181, %v185, %v187
    %v189 = vsel %vm181, %v187, %v185
    %s190 = scalar_lea.vmem %s2, 2
    %v191 = vld [vmem:[%s190] ss:$8 sm:$0x3]
    %v193 = vlaneseq
    %v194 = vshrl.u32 %v193, 7
    %v195 = vsub.s32 0, %v194
    %v196 = vrot.slane %v191, %v195
    %v197 = vlaneseq
    %v198 = vshrl.u32 %v197, 7
    %v199 = vsub.s32 1, %v198
    %v200 = vrot.slane %v191, %v199
    %v203 = vmul.f32 %v183, %v196
    %v204 = vmul.f32 %v182, %v200
    %v205 = vmul.f32 %v189, %v196
    %v206 = vmul.f32 %v188, %v200
    %s207 = scalar_lea.vmem %s2, 3
    %v208 = vld [vmem:[%s207] ss:$8 sm:$0x3]
    %v210 = vlaneseq
    %v211 = vshrl.u32 %v210, 7
    %v212 = vsub.s32 0, %v211
    %v213 = vrot.slane %v208, %v212
    %v214 = vlaneseq
    %v215 = vshrl.u32 %v214, 7
    %v216 = vsub.s32 1, %v215
    %v217 = vrot.slane %v208, %v216
    %v220 = vmul.f32 %v49, %v213
    %v221 = vmul.f32 %v56, %v217
    %v222 = vmul.f32 %v63, %v213
    %v223 = vmul.f32 %v70, %v217
    %v224 = vmul.f32 %v77, %v213
    %v225 = vmul.f32 %v84, %v217
    %v226 = vmul.f32 %v91, %v213
    %v227 = vmul.f32 %v98, %v217
    %228 = vrot.lane.b32.xlu0 %v104, 127
    %v229 = vpop.permute.xlu0 %228
    %230 = vrot.lane.b32.xlu0 %v105, 127
    %v231 = vpop.permute.xlu0 %230
    %vm232 = vcmp.lt.s32.totalorder %v113, 127
    %v233 = vsel %vm232, %v229, %v231
    %v234 = vsel %vm232, %v231, %v229
    %235 = vrot.lane.b32.xlu0 %v121, 127
    %v236 = vpop.permute.xlu0 %235
    %237 = vrot.lane.b32.xlu0 %v122, 127
    %v238 = vpop.permute.xlu0 %237
    %v239 = vsel %vm232, %v236, %v238
    %v240 = vsel %vm232, %v238, %v236
    %s241 = scalar_lea.vmem %s2, 4
    %v242 = vld [vmem:[%s241] ss:$8 sm:$0x3]
    %v244 = vlaneseq
    %v245 = vshrl.u32 %v244, 7
    %v246 = vsub.s32 0, %v245
    %v247 = vrot.slane %v242, %v246
    %v248 = vlaneseq
    %v249 = vshrl.u32 %v248, 7
    %v250 = vsub.s32 1, %v249
    %v251 = vrot.slane %v242, %v250
    %v254 = vmul.f32 %v233, %v247
    %v255 = vmul.f32 %v234, %v251
    %v256 = vmul.f32 %v239, %v247
    %v257 = vmul.f32 %v240, %v251
    %258 = vrot.lane.b32.xlu0 %v104, 126
    %v259 = vpop.permute.xlu0 %258
    %260 = vrot.lane.b32.xlu0 %v105, 126
    %v261 = vpop.permute.xlu0 %260
    %vm262 = vcmp.lt.s32.totalorder %v113, 126
    %v263 = vsel %vm262, %v259, %v261
    %v264 = vsel %vm262, %v261, %v259
    %265 = vrot.lane.b32.xlu0 %v121, 126
    %v266 = vpop.permute.xlu0 %265
    %267 = vrot.lane.b32.xlu0 %v122, 126
    %v268 = vpop.permute.xlu0 %267
    %v269 = vsel %vm262, %v266, %v268
    %v270 = vsel %vm262, %v268, %v266
    %s271 = scalar_lea.vmem %s2, 5
    %v272 = vld [vmem:[%s271] ss:$8 sm:$0x3]
    %v274 = vlaneseq
    %v275 = vshrl.u32 %v274, 7
    %v276 = vsub.s32 0, %v275
    %v277 = vrot.slane %v272, %v276
    %v278 = vlaneseq
    %v279 = vshrl.u32 %v278, 7
    %v280 = vsub.s32 1, %v279
    %v281 = vrot.slane %v272, %v280
    %v284 = vmul.f32 %v263, %v277
    %v285 = vmul.f32 %v264, %v281
    %v286 = vmul.f32 %v269, %v277
    %v287 = vmul.f32 %v270, %v281
    %288 = vrot.lane.b32.xlu0 %v104, 125
    %v289 = vpop.permute.xlu0 %288
    %290 = vrot.lane.b32.xlu0 %v105, 125
    %v291 = vpop.permute.xlu0 %290
    %vm292 = vcmp.lt.s32.totalorder %v113, 125
    %v293 = vsel %vm292, %v289, %v291
    %v294 = vsel %vm292, %v291, %v289
    %295 = vrot.lane.b32.xlu0 %v121, 125
    %v296 = vpop.permute.xlu0 %295
    %297 = vrot.lane.b32.xlu0 %v122, 125
    %v298 = vpop.permute.xlu0 %297
    %v299 = vsel %vm292, %v296, %v298
    %v300 = vsel %vm292, %v298, %v296
    %s301 = scalar_lea.vmem %s2, 6
    %v302 = vld [vmem:[%s301] ss:$8 sm:$0x3]
    %v304 = vlaneseq
    %v305 = vshrl.u32 %v304, 7
    %v306 = vsub.s32 0, %v305
    %v307 = vrot.slane %v302, %v306
    %v308 = vlaneseq
    %v309 = vshrl.u32 %v308, 7
    %v310 = vsub.s32 1, %v309
    %v311 = vrot.slane %v302, %v310
    %v314 = vmul.f32 %v293, %v307
    %v315 = vmul.f32 %v294, %v311
    %v316 = vmul.f32 %v299, %v307
    %v317 = vmul.f32 %v300, %v311
    %s318 = sld [smem:[#allocation2]]
    %v319 = vstv %s318
    %s320 = sld [smem:[#allocation3]]
    %v321 = vstv %s320
    %v322 = vmul.f32 %v143, %v321
    %v323 = vmul.f32 %v144, %v321
    %s324 = sld [smem:[#allocation3 + $0x31]]
    %v325 = vstv %s324
    %v326 = vmul.f32 %v145, %v325
    %v327 = vmul.f32 %v146, %v325
    %s328 = sld [smem:[#allocation3 + $0x1]]
    %v329 = vstv %s328
    %v330 = vmul.f32 %v173, %v329
    %v331 = vmul.f32 %v174, %v329
    %v332 = vadd.f32 %v322, %v330
    %v333 = vadd.f32 %v323, %v331
    %s334 = sld [smem:[#allocation3 + $0x32]]
    %v335 = vstv %s334
    %v336 = vmul.f32 %v175, %v335
    %v337 = vmul.f32 %v176, %v335
    %v338 = vadd.f32 %v326, %v336
    %v339 = vadd.f32 %v327, %v337
    %s340 = sld [smem:[#allocation3 + $0x2]]
    %v341 = vstv %s340
    %v342 = vmul.f32 %v203, %v341
    %v343 = vmul.f32 %v204, %v341
    %v344 = vadd.f32 %v332, %v342
    %v345 = vadd.f32 %v333, %v343
    %s346 = sld [smem:[#allocation3 + $0x33]]
    %v347 = vstv %s346
    %v348 = vmul.f32 %v205, %v347
    %v349 = vmul.f32 %v206, %v347
    %v350 = vadd.f32 %v338, %v348
    %v351 = vadd.f32 %v339, %v349
    %s352 = sld [smem:[#allocation3 + $0x3]]
    %v353 = vstv %s352
    %v354 = vmul.f32 %v220, %v353
    %v355 = vmul.f32 %v221, %v353
    %v356 = vmul.f32 %v222, %v353
    %v357 = vmul.f32 %v223, %v353
    %v362 = vrot.slane %v356, 7
    %v363 = vsel %vm103, %v362, %v354
    %v364 = vrot.slane %v357, 7
    %v365 = vsel %vm103, %v364, %v355
    %v368 = vadd.f32 %v344, %v363
    %v369 = vadd.f32 %v345, %v365
    %s370 = sld [smem:[#allocation3 + $0x34]]
    %v371 = vstv %s370
    %v372 = vmul.f32 %v224, %v371
    %v373 = vmul.f32 %v225, %v371
    %v374 = vmul.f32 %v226, %v371
    %v375 = vmul.f32 %v227, %v371
    %v380 = vrot.slane %v374, 7
    %v381 = vsel %vm103, %v380, %v372
    %v382 = vrot.slane %v375, 7
    %v383 = vsel %vm103, %v382, %v373
    %v386 = vadd.f32 %v350, %v381
    %v387 = vadd.f32 %v351, %v383
    %s388 = sld [smem:[#allocation3 + $0x4]]
    %v389 = vstv %s388
    %v390 = vmul.f32 %v254, %v389
    %v391 = vmul.f32 %v255, %v389
    %v392 = vadd.f32 %v368, %v390
    %v393 = vadd.f32 %v369, %v391
    %s394 = sld [smem:[#allocation3 + $0x35]]
    %v395 = vstv %s394
    %v396 = vmul.f32 %v256, %v395
    %v397 = vmul.f32 %v257, %v395
    %v398 = vadd.f32 %v386, %v396
    %v399 = vadd.f32 %v387, %v397
    %s400 = sld [smem:[#allocation3 + $0x5]]
    %v401 = vstv %s400
    %v402 = vmul.f32 %v284, %v401
    %v403 = vmul.f32 %v285, %v401
    %v404 = vadd.f32 %v392, %v402
    %v405 = vadd.f32 %v393, %v403
    %s406 = sld [smem:[#allocation3 + $0x36]]
    %v407 = vstv %s406
    %v408 = vmul.f32 %v286, %v407
    %v409 = vmul.f32 %v287, %v407
    %v410 = vadd.f32 %v398, %v408
    %v411 = vadd.f32 %v399, %v409
    %s412 = sld [smem:[#allocation3 + $0x6]]
    %v413 = vstv %s412
    %v414 = vmul.f32 %v314, %v413
    %v415 = vmul.f32 %v315, %v413
    %v416 = vadd.f32 %v404, %v414
    %v417 = vadd.f32 %v405, %v415
    %s418 = sld [smem:[#allocation3 + $0x37]]
    %v419 = vstv %s418
    %v420 = vmul.f32 %v316, %v419
    %v421 = vmul.f32 %v317, %v419
    %v422 = vadd.f32 %v410, %v420
    %v423 = vadd.f32 %v411, %v421
    %v424 = vadd.f32 %v416, %v422
    %v425 = vadd.f32 %v417, %v423
    %426 = vrot.lane.b32.xlu0 %v424, 48
    %v427 = vpop.permute.xlu0 %426
    %428 = vrot.lane.b32.xlu0 %v425, 48
    %v429 = vpop.permute.xlu0 %428
    %vm430 = vcmp.lt.s32.totalorder %v113, 48
    %v431 = vsel %vm430, %v427, %v429
    %v432 = vsel %vm430, %v429, %v427
    %v433 = vld [vmem:[%s3] ss:$8 sm:$0x3]
    %v435 = vlaneseq
    %v436 = vshrl.u32 %v435, 7
    %v437 = vsub.s32 0, %v436
    %v438 = vrot.slane %v433, %v437
    %v439 = vlaneseq
    %v440 = vshrl.u32 %v439, 7
    %v441 = vsub.s32 1, %v440
    %v442 = vrot.slane %v433, %v441
    %v445 = vmul.f32 %v432, %v438
    %v446 = vmul.f32 %v431, %v442
    %v447 = vadd.f32 %v319, %v445
    %v448 = vadd.f32 %v319, %v446
    %s449 = sld [smem:[#allocation3 + $0x7]]
    %v450 = vstv %s449
    %v451 = vmul.f32 %v143, %v450
    %v452 = vmul.f32 %v144, %v450
    %s453 = sld [smem:[#allocation3 + $0x38]]
    %v454 = vstv %s453
    %v455 = vmul.f32 %v145, %v454
    %v456 = vmul.f32 %v146, %v454
    %s457 = sld [smem:[#allocation3 + $0x8]]
    %v458 = vstv %s457
    %v459 = vmul.f32 %v173, %v458
    %v460 = vmul.f32 %v174, %v458
    %v461 = vadd.f32 %v451, %v459
    %v462 = vadd.f32 %v452, %v460
    %s463 = sld [smem:[#allocation3 + $0x39]]
    %v464 = vstv %s463
    %v465 = vmul.f32 %v175, %v464
    %v466 = vmul.f32 %v176, %v464
    %v467 = vadd.f32 %v455, %v465
    %v468 = vadd.f32 %v456, %v466
    %s469 = sld [smem:[#allocation3 + $0x9]]
    %v470 = vstv %s469
    %v471 = vmul.f32 %v203, %v470
    %v472 = vmul.f32 %v204, %v470
    %v473 = vadd.f32 %v461, %v471
    %v474 = vadd.f32 %v462, %v472
    %s475 = sld [smem:[#allocation3 + $0x3a]]
    %v476 = vstv %s475
    %v477 = vmul.f32 %v205, %v476
    %v478 = vmul.f32 %v206, %v476
    %v479 = vadd.f32 %v467, %v477
    %v480 = vadd.f32 %v468, %v478
    %s481 = sld [smem:[#allocation3 + $0xa]]
    %v482 = vstv %s481
    %v483 = vmul.f32 %v220, %v482
    %v484 = vmul.f32 %v221, %v482
    %v485 = vmul.f32 %v222, %v482
    %v486 = vmul.f32 %v223, %v482
    %v491 = vrot.slane %v485, 7
    %v492 = vsel %vm103, %v491, %v483
    %v493 = vrot.slane %v486, 7
    %v494 = vsel %vm103, %v493, %v484
    %v497 = vadd.f32 %v473, %v492
    %v498 = vadd.f32 %v474, %v494
    %s499 = sld [smem:[#allocation3 + $0x3b]]
    %v500 = vstv %s499
    %v501 = vmul.f32 %v224, %v500
    %v502 = vmul.f32 %v225, %v500
    %v503 = vmul.f32 %v226, %v500
    %v504 = vmul.f32 %v227, %v500
    %v509 = vrot.slane %v503, 7
    %v510 = vsel %vm103, %v509, %v501
    %v511 = vrot.slane %v504, 7
    %v512 = vsel %vm103, %v511, %v502
    %v515 = vadd.f32 %v479, %v510
    %v516 = vadd.f32 %v480, %v512
    %s517 = sld [smem:[#allocation3 + $0xb]]
    %v518 = vstv %s517
    %v519 = vmul.f32 %v254, %v518
    %v520 = vmul.f32 %v255, %v518
    %v521 = vadd.f32 %v497, %v519
    %v522 = vadd.f32 %v498, %v520
    %s523 = sld [smem:[#allocation3 + $0x3c]]
    %v524 = vstv %s523
    %v525 = vmul.f32 %v256, %v524
    %v526 = vmul.f32 %v257, %v524
    %v527 = vadd.f32 %v515, %v525
    %v528 = vadd.f32 %v516, %v526
    %s529 = sld [smem:[#allocation3 + $0xc]]
    %v530 = vstv %s529
    %v531 = vmul.f32 %v284, %v530
    %v532 = vmul.f32 %v285, %v530
    %v533 = vadd.f32 %v521, %v531
    %v534 = vadd.f32 %v522, %v532
    %s535 = sld [smem:[#allocation3 + $0x3d]]
    %v536 = vstv %s535
    %v537 = vmul.f32 %v286, %v536
    %v538 = vmul.f32 %v287, %v536
    %v539 = vadd.f32 %v527, %v537
    %v540 = vadd.f32 %v528, %v538
    %s541 = sld [smem:[#allocation3 + $0xd]]
    %v542 = vstv %s541
    %v543 = vmul.f32 %v314, %v542
    %v544 = vmul.f32 %v315, %v542
    %v545 = vadd.f32 %v533, %v543
    %v546 = vadd.f32 %v534, %v544
    %s547 = sld [smem:[#allocation3 + $0x3e]]
    %v548 = vstv %s547
    %v549 = vmul.f32 %v316, %v548
    %v550 = vmul.f32 %v317, %v548
    %v551 = vadd.f32 %v539, %v549
    %v552 = vadd.f32 %v540, %v550
    %v553 = vadd.f32 %v545, %v551
    %v554 = vadd.f32 %v546, %v552
    %555 = vrot.lane.b32.xlu0 %v553, 32
    %v556 = vpop.permute.xlu0 %555
    %557 = vrot.lane.b32.xlu0 %v554, 32
    %v558 = vpop.permute.xlu0 %557
    %vm559 = vcmp.lt.s32.totalorder %v113, 32
    %v560 = vsel %vm559, %v556, %v558
    %v561 = vsel %vm559, %v558, %v556
    %s562 = scalar_lea.vmem %s3, 1
    %v563 = vld [vmem:[%s562] ss:$8 sm:$0x3]
    %v565 = vlaneseq
    %v566 = vshrl.u32 %v565, 7
    %v567 = vsub.s32 0, %v566
    %v568 = vrot.slane %v563, %v567
    %v569 = vlaneseq
    %v570 = vshrl.u32 %v569, 7
    %v571 = vsub.s32 1, %v570
    %v572 = vrot.slane %v563, %v571
    %v575 = vmul.f32 %v561, %v568
    %v576 = vmul.f32 %v560, %v572
    %v577 = vadd.f32 %v575, 0.0
    %v578 = vadd.f32 %v576, 0.0
    %s579 = sld [smem:[#allocation3 + $0xe]]
    %v580 = vstv %s579
    %v581 = vmul.f32 %v143, %v580
    %v582 = vmul.f32 %v144, %v580
    %s583 = sld [smem:[#allocation3 + $0x3f]]
    %v584 = vstv %s583
    %v585 = vmul.f32 %v145, %v584
    %v586 = vmul.f32 %v146, %v584
    %s587 = sld [smem:[#allocation3 + $0xf]]
    %v588 = vstv %s587
    %v589 = vmul.f32 %v173, %v588
    %v590 = vmul.f32 %v174, %v588
    %v591 = vadd.f32 %v581, %v589
    %v592 = vadd.f32 %v582, %v590
    %s593 = sld [smem:[#allocation3 + $0x40]]
    %v594 = vstv %s593
    %v595 = vmul.f32 %v175, %v594
    %v596 = vmul.f32 %v176, %v594
    %v597 = vadd.f32 %v585, %v595
    %v598 = vadd.f32 %v586, %v596
    %s599 = sld [smem:[#allocation3 + $0x10]]
    %v600 = vstv %s599
    %v601 = vmul.f32 %v203, %v600
    %v602 = vmul.f32 %v204, %v600
    %v603 = vadd.f32 %v591, %v601
    %v604 = vadd.f32 %v592, %v602
    %s605 = sld [smem:[#allocation3 + $0x41]]
    %v606 = vstv %s605
    %v607 = vmul.f32 %v205, %v606
    %v608 = vmul.f32 %v206, %v606
    %v609 = vadd.f32 %v597, %v607
    %v610 = vadd.f32 %v598, %v608
    %s611 = sld [smem:[#allocation3 + $0x11]]
    %v612 = vstv %s611
    %v613 = vmul.f32 %v220, %v612
    %v614 = vmul.f32 %v221, %v612
    %v615 = vmul.f32 %v222, %v612
    %v616 = vmul.f32 %v223, %v612
    %v621 = vrot.slane %v615, 7
    %v622 = vsel %vm103, %v621, %v613
    %v623 = vrot.slane %v616, 7
    %v624 = vsel %vm103, %v623, %v614
    %v627 = vadd.f32 %v603, %v622
    %v628 = vadd.f32 %v604, %v624
    %s629 = sld [smem:[#allocation3 + $0x42]]
    %v630 = vstv %s629
    %v631 = vmul.f32 %v224, %v630
    %v632 = vmul.f32 %v225, %v630
    %v633 = vmul.f32 %v226, %v630
    %v634 = vmul.f32 %v227, %v630
    %v639 = vrot.slane %v633, 7
    %v640 = vsel %vm103, %v639, %v631
    %v641 = vrot.slane %v634, 7
    %v642 = vsel %vm103, %v641, %v632
    %v645 = vadd.f32 %v609, %v640
    %v646 = vadd.f32 %v610, %v642
    %s647 = sld [smem:[#allocation3 + $0x12]]
    %v648 = vstv %s647
    %v649 = vmul.f32 %v254, %v648
    %v650 = vmul.f32 %v255, %v648
    %v651 = vadd.f32 %v627, %v649
    %v652 = vadd.f32 %v628, %v650
    %s653 = sld [smem:[#allocation3 + $0x43]]
    %v654 = vstv %s653
    %v655 = vmul.f32 %v256, %v654
    %v656 = vmul.f32 %v257, %v654
    %v657 = vadd.f32 %v645, %v655
    %v658 = vadd.f32 %v646, %v656
    %s659 = sld [smem:[#allocation3 + $0x13]]
    %v660 = vstv %s659
    %v661 = vmul.f32 %v284, %v660
    %v662 = vmul.f32 %v285, %v660
    %v663 = vadd.f32 %v651, %v661
    %v664 = vadd.f32 %v652, %v662
    %s665 = sld [smem:[#allocation3 + $0x44]]
    %v666 = vstv %s665
    %v667 = vmul.f32 %v286, %v666
    %v668 = vmul.f32 %v287, %v666
    %v669 = vadd.f32 %v657, %v667
    %v670 = vadd.f32 %v658, %v668
    %s671 = sld [smem:[#allocation3 + $0x14]]
    %v672 = vstv %s671
    %v673 = vmul.f32 %v314, %v672
    %v674 = vmul.f32 %v315, %v672
    %v675 = vadd.f32 %v663, %v673
    %v676 = vadd.f32 %v664, %v674
    %s677 = sld [smem:[#allocation3 + $0x45]]
    %v678 = vstv %s677
    %v679 = vmul.f32 %v316, %v678
    %v680 = vmul.f32 %v317, %v678
    %v681 = vadd.f32 %v669, %v679
    %v682 = vadd.f32 %v670, %v680
    %v683 = vadd.f32 %v675, %v681
    %v684 = vadd.f32 %v676, %v682
    %685 = vrot.lane.b32.xlu0 %v683, 16
    %v686 = vpop.permute.xlu0 %685
    %687 = vrot.lane.b32.xlu0 %v684, 16
    %v688 = vpop.permute.xlu0 %687
    %vm689 = vcmp.lt.s32.totalorder %v113, 16
    %v690 = vsel %vm689, %v686, %v688
    %v691 = vsel %vm689, %v688, %v686
    %s692 = scalar_lea.vmem %s3, 2
    %v693 = vld [vmem:[%s692] ss:$8 sm:$0x3]
    %v695 = vlaneseq
    %v696 = vshrl.u32 %v695, 7
    %v697 = vsub.s32 0, %v696
    %v698 = vrot.slane %v693, %v697
    %v699 = vlaneseq
    %v700 = vshrl.u32 %v699, 7
    %v701 = vsub.s32 1, %v700
    %v702 = vrot.slane %v693, %v701
    %v705 = vmul.f32 %v691, %v698
    %v706 = vmul.f32 %v690, %v702
    %v707 = vadd.f32 %v447, %v705
    %v708 = vadd.f32 %v448, %v706
    %s709 = sld [smem:[#allocation3 + $0x15]]
    %v710 = vstv %s709
    %v711 = vmul.f32 %v143, %v710
    %v712 = vmul.f32 %v144, %v710
    %s713 = sld [smem:[#allocation3 + $0x46]]
    %v714 = vstv %s713
    %v715 = vmul.f32 %v145, %v714
    %v716 = vmul.f32 %v146, %v714
    %s717 = sld [smem:[#allocation3 + $0x16]]
    %v718 = vstv %s717
    %v719 = vmul.f32 %v173, %v718
    %v720 = vmul.f32 %v174, %v718
    %v721 = vadd.f32 %v711, %v719
    %v722 = vadd.f32 %v712, %v720
    %s723 = sld [smem:[#allocation3 + $0x47]]
    %v724 = vstv %s723
    %v725 = vmul.f32 %v175, %v724
    %v726 = vmul.f32 %v176, %v724
    %v727 = vadd.f32 %v715, %v725
    %v728 = vadd.f32 %v716, %v726
    %s729 = sld [smem:[#allocation3 + $0x17]]
    %v730 = vstv %s729
    %v731 = vmul.f32 %v203, %v730
    %v732 = vmul.f32 %v204, %v730
    %v733 = vadd.f32 %v721, %v731
    %v734 = vadd.f32 %v722, %v732
    %s735 = sld [smem:[#allocation3 + $0x48]]
    %v736 = vstv %s735
    %v737 = vmul.f32 %v205, %v736
    %v738 = vmul.f32 %v206, %v736
    %v739 = vadd.f32 %v727, %v737
    %v740 = vadd.f32 %v728, %v738
    %s741 = sld [smem:[#allocation3 + $0x18]]
    %v742 = vstv %s741
    %v743 = vmul.f32 %v220, %v742
    %v744 = vmul.f32 %v221, %v742
    %v745 = vmul.f32 %v222, %v742
    %v746 = vmul.f32 %v223, %v742
    %v751 = vrot.slane %v745, 7
    %v752 = vsel %vm103, %v751, %v743
    %v753 = vrot.slane %v746, 7
    %v754 = vsel %vm103, %v753, %v744
    %v757 = vadd.f32 %v733, %v752
    %v758 = vadd.f32 %v734, %v754
    %s759 = sld [smem:[#allocation3 + $0x49]]
    %v760 = vstv %s759
    %v761 = vmul.f32 %v224, %v760
    %v762 = vmul.f32 %v225, %v760
    %v763 = vmul.f32 %v226, %v760
    %v764 = vmul.f32 %v227, %v760
    %v769 = vrot.slane %v763, 7
    %v770 = vsel %vm103, %v769, %v761
    %v771 = vrot.slane %v764, 7
    %v772 = vsel %vm103, %v771, %v762
    %v775 = vadd.f32 %v739, %v770
    %v776 = vadd.f32 %v740, %v772
    %s777 = sld [smem:[#allocation3 + $0x19]]
    %v778 = vstv %s777
    %v779 = vmul.f32 %v254, %v778
    %v780 = vmul.f32 %v255, %v778
    %v781 = vadd.f32 %v757, %v779
    %v782 = vadd.f32 %v758, %v780
    %s783 = sld [smem:[#allocation3 + $0x4a]]
    %v784 = vstv %s783
    %v785 = vmul.f32 %v256, %v784
    %v786 = vmul.f32 %v257, %v784
    %v787 = vadd.f32 %v775, %v785
    %v788 = vadd.f32 %v776, %v786
    %s789 = sld [smem:[#allocation3 + $0x1a]]
    %v790 = vstv %s789
    %v791 = vmul.f32 %v284, %v790
    %v792 = vmul.f32 %v285, %v790
    %v793 = vadd.f32 %v781, %v791
    %v794 = vadd.f32 %v782, %v792
    %s795 = sld [smem:[#allocation3 + $0x4b]]
    %v796 = vstv %s795
    %v797 = vmul.f32 %v286, %v796
    %v798 = vmul.f32 %v287, %v796
    %v799 = vadd.f32 %v787, %v797
    %v800 = vadd.f32 %v788, %v798
    %s801 = sld [smem:[#allocation3 + $0x1b]]
    %v802 = vstv %s801
    %v803 = vmul.f32 %v314, %v802
    %v804 = vmul.f32 %v315, %v802
    %v805 = vadd.f32 %v793, %v803
    %v806 = vadd.f32 %v794, %v804
    %s807 = sld [smem:[#allocation3 + $0x4c]]
    %v808 = vstv %s807
    %v809 = vmul.f32 %v316, %v808
    %v810 = vmul.f32 %v317, %v808
    %v811 = vadd.f32 %v799, %v809
    %v812 = vadd.f32 %v800, %v810
    %v813 = vadd.f32 %v805, %v811
    %v814 = vadd.f32 %v806, %v812
    %s815 = scalar_lea.vmem %s3, 3
    %v816 = vld [vmem:[%s815] ss:$8 sm:$0x3]
    %v818 = vlaneseq
    %v819 = vshrl.u32 %v818, 7
    %v820 = vsub.s32 0, %v819
    %v821 = vrot.slane %v816, %v820
    %v822 = vlaneseq
    %v823 = vshrl.u32 %v822, 7
    %v824 = vsub.s32 1, %v823
    %v825 = vrot.slane %v816, %v824
    %v828 = vmul.f32 %v813, %v821
    %v829 = vmul.f32 %v814, %v825
    %v830 = vadd.f32 %v577, %v828
    %v831 = vadd.f32 %v578, %v829
    %s832 = sld [smem:[#allocation3 + $0x1c]]
    %v833 = vstv %s832
    %v834 = vmul.f32 %v143, %v833
    %v835 = vmul.f32 %v144, %v833
    %s836 = sld [smem:[#allocation3 + $0x4d]]
    %v837 = vstv %s836
    %v838 = vmul.f32 %v145, %v837
    %v839 = vmul.f32 %v146, %v837
    %s840 = sld [smem:[#allocation3 + $0x1d]]
    %v841 = vstv %s840
    %v842 = vmul.f32 %v173, %v841
    %v843 = vmul.f32 %v174, %v841
    %v844 = vadd.f32 %v834, %v842
    %v845 = vadd.f32 %v835, %v843
    %s846 = sld [smem:[#allocation3 + $0x4e]]
    %v847 = vstv %s846
    %v848 = vmul.f32 %v175, %v847
    %v849 = vmul.f32 %v176, %v847
    %v850 = vadd.f32 %v838, %v848
    %v851 = vadd.f32 %v839, %v849
    %s852 = sld [smem:[#allocation3 + $0x1e]]
    %v853 = vstv %s852
    %v854 = vmul.f32 %v203, %v853
    %v855 = vmul.f32 %v204, %v853
    %v856 = vadd.f32 %v844, %v854
    %v857 = vadd.f32 %v845, %v855
    %s858 = sld [smem:[#allocation3 + $0x4f]]
    %v859 = vstv %s858
    %v860 = vmul.f32 %v205, %v859
    %v861 = vmul.f32 %v206, %v859
    %v862 = vadd.f32 %v850, %v860
    %v863 = vadd.f32 %v851, %v861
    %s864 = sld [smem:[#allocation3 + $0x1f]]
    %v865 = vstv %s864
    %v866 = vmul.f32 %v220, %v865
    %v867 = vmul.f32 %v221, %v865
    %v868 = vmul.f32 %v222, %v865
    %v869 = vmul.f32 %v223, %v865
    %v874 = vrot.slane %v868, 7
    %v875 = vsel %vm103, %v874, %v866
    %v876 = vrot.slane %v869, 7
    %v877 = vsel %vm103, %v876, %v867
    %v880 = vadd.f32 %v856, %v875
    %v881 = vadd.f32 %v857, %v877
    %s882 = sld [smem:[#allocation3 + $0x50]]
    %v883 = vstv %s882
    %v884 = vmul.f32 %v224, %v883
    %v885 = vmul.f32 %v225, %v883
    %v886 = vmul.f32 %v226, %v883
    %v887 = vmul.f32 %v227, %v883
    %v892 = vrot.slane %v886, 7
    %v893 = vsel %vm103, %v892, %v884
    %v894 = vrot.slane %v887, 7
    %v895 = vsel %vm103, %v894, %v885
    %v898 = vadd.f32 %v862, %v893
    %v899 = vadd.f32 %v863, %v895
    %s900 = sld [smem:[#allocation3 + $0x20]]
    %v901 = vstv %s900
    %v902 = vmul.f32 %v254, %v901
    %v903 = vmul.f32 %v255, %v901
    %v904 = vadd.f32 %v880, %v902
    %v905 = vadd.f32 %v881, %v903
    %s906 = sld [smem:[#allocation3 + $0x51]]
    %v907 = vstv %s906
    %v908 = vmul.f32 %v256, %v907
    %v909 = vmul.f32 %v257, %v907
    %v910 = vadd.f32 %v898, %v908
    %v911 = vadd.f32 %v899, %v909
    %s912 = sld [smem:[#allocation3 + $0x21]]
    %v913 = vstv %s912
    %v914 = vmul.f32 %v284, %v913
    %v915 = vmul.f32 %v285, %v913
    %v916 = vadd.f32 %v904, %v914
    %v917 = vadd.f32 %v905, %v915
    %s918 = sld [smem:[#allocation3 + $0x52]]
    %v919 = vstv %s918
    %v920 = vmul.f32 %v286, %v919
    %v921 = vmul.f32 %v287, %v919
    %v922 = vadd.f32 %v910, %v920
    %v923 = vadd.f32 %v911, %v921
    %s924 = sld [smem:[#allocation3 + $0x22]]
    %v925 = vstv %s924
    %v926 = vmul.f32 %v314, %v925
    %v927 = vmul.f32 %v315, %v925
    %v928 = vadd.f32 %v916, %v926
    %v929 = vadd.f32 %v917, %v927
    %s930 = sld [smem:[#allocation3 + $0x53]]
    %v931 = vstv %s930
    %v932 = vmul.f32 %v316, %v931
    %v933 = vmul.f32 %v317, %v931
    %v934 = vadd.f32 %v922, %v932
    %v935 = vadd.f32 %v923, %v933
    %v936 = vadd.f32 %v928, %v934
    %v937 = vadd.f32 %v929, %v935
    %938 = vrot.lane.b32.xlu0 %v936, 112
    %v939 = vpop.permute.xlu0 %938
    %940 = vrot.lane.b32.xlu0 %v937, 112
    %v941 = vpop.permute.xlu0 %940
    %vm942 = vcmp.lt.s32.totalorder %v113, 112
    %v943 = vsel %vm942, %v939, %v941
    %v944 = vsel %vm942, %v941, %v939
    %s945 = scalar_lea.vmem %s3, 4
    %v946 = vld [vmem:[%s945] ss:$8 sm:$0x3]
    %v948 = vlaneseq
    %v949 = vshrl.u32 %v948, 7
    %v950 = vsub.s32 0, %v949
    %v951 = vrot.slane %v946, %v950
    %v952 = vlaneseq
    %v953 = vshrl.u32 %v952, 7
    %v954 = vsub.s32 1, %v953
    %v955 = vrot.slane %v946, %v954
    %v958 = vmul.f32 %v943, %v951
    %v959 = vmul.f32 %v944, %v955
    %v960 = vadd.f32 %v707, %v958
    %v961 = vadd.f32 %v708, %v959
    %s962 = sld [smem:[#allocation3 + $0x23]]
    %v963 = vstv %s962
    %v964 = vmul.f32 %v143, %v963
    %v965 = vmul.f32 %v144, %v963
    %s966 = sld [smem:[#allocation3 + $0x54]]
    %v967 = vstv %s966
    %v968 = vmul.f32 %v145, %v967
    %v969 = vmul.f32 %v146, %v967
    %s970 = sld [smem:[#allocation3 + $0x24]]
    %v971 = vstv %s970
    %v972 = vmul.f32 %v173, %v971
    %v973 = vmul.f32 %v174, %v971
    %v974 = vadd.f32 %v964, %v972
    %v975 = vadd.f32 %v965, %v973
    %s976 = sld [smem:[#allocation3 + $0x55]]
    %v977 = vstv %s976
    %v978 = vmul.f32 %v175, %v977
    %v979 = vmul.f32 %v176, %v977
    %v980 = vadd.f32 %v968, %v978
    %v981 = vadd.f32 %v969, %v979
    %s982 = sld [smem:[#allocation3 + $0x25]]
    %v983 = vstv %s982
    %v984 = vmul.f32 %v203, %v983
    %v985 = vmul.f32 %v204, %v983
    %v986 = vadd.f32 %v974, %v984
    %v987 = vadd.f32 %v975, %v985
    %s988 = sld [smem:[#allocation3 + $0x56]]
    %v989 = vstv %s988
    %v990 = vmul.f32 %v205, %v989
    %v991 = vmul.f32 %v206, %v989
    %v992 = vadd.f32 %v980, %v990
    %v993 = vadd.f32 %v981, %v991
    %s994 = sld [smem:[#allocation3 + $0x26]]
    %v995 = vstv %s994
    %v996 = vmul.f32 %v220, %v995
    %v997 = vmul.f32 %v221, %v995
    %v998 = vmul.f32 %v222, %v995
    %v999 = vmul.f32 %v223, %v995
    %v1004 = vrot.slane %v998, 7
    %v1005 = vsel %vm103, %v1004, %v996
    %v1006 = vrot.slane %v999, 7
    %v1007 = vsel %vm103, %v1006, %v997
    %v1010 = vadd.f32 %v986, %v1005
    %v1011 = vadd.f32 %v987, %v1007
    %s1012 = sld [smem:[#allocation3 + $0x57]]
    %v1013 = vstv %s1012
    %v1014 = vmul.f32 %v224, %v1013
    %v1015 = vmul.f32 %v225, %v1013
    %v1016 = vmul.f32 %v226, %v1013
    %v1017 = vmul.f32 %v227, %v1013
    %v1022 = vrot.slane %v1016, 7
    %v1023 = vsel %vm103, %v1022, %v1014
    %v1024 = vrot.slane %v1017, 7
    %v1025 = vsel %vm103, %v1024, %v1015
    %v1028 = vadd.f32 %v992, %v1023
    %v1029 = vadd.f32 %v993, %v1025
    %s1030 = sld [smem:[#allocation3 + $0x27]]
    %v1031 = vstv %s1030
    %v1032 = vmul.f32 %v254, %v1031
    %v1033 = vmul.f32 %v255, %v1031
    %v1034 = vadd.f32 %v1010, %v1032
    %v1035 = vadd.f32 %v1011, %v1033
    %s1036 = sld [smem:[#allocation3 + $0x58]]
    %v1037 = vstv %s1036
    %v1038 = vmul.f32 %v256, %v1037
    %v1039 = vmul.f32 %v257, %v1037
    %v1040 = vadd.f32 %v1028, %v1038
    %v1041 = vadd.f32 %v1029, %v1039
    %s1042 = sld [smem:[#allocation3 + $0x28]]
    %v1043 = vstv %s1042
    %v1044 = vmul.f32 %v284, %v1043
    %v1045 = vmul.f32 %v285, %v1043
    %v1046 = vadd.f32 %v1034, %v1044
    %v1047 = vadd.f32 %v1035, %v1045
    %s1048 = sld [smem:[#allocation3 + $0x59]]
    %v1049 = vstv %s1048
    %v1050 = vmul.f32 %v286, %v1049
    %v1051 = vmul.f32 %v287, %v1049
    %v1052 = vadd.f32 %v1040, %v1050
    %v1053 = vadd.f32 %v1041, %v1051
    %s1054 = sld [smem:[#allocation3 + $0x29]]
    %v1055 = vstv %s1054
    %v1056 = vmul.f32 %v314, %v1055
    %v1057 = vmul.f32 %v315, %v1055
    %v1058 = vadd.f32 %v1046, %v1056
    %v1059 = vadd.f32 %v1047, %v1057
    %s1060 = sld [smem:[#allocation3 + $0x5a]]
    %v1061 = vstv %s1060
    %v1062 = vmul.f32 %v316, %v1061
    %v1063 = vmul.f32 %v317, %v1061
    %v1064 = vadd.f32 %v1052, %v1062
    %v1065 = vadd.f32 %v1053, %v1063
    %v1066 = vadd.f32 %v1058, %v1064
    %v1067 = vadd.f32 %v1059, %v1065
    %1068 = vrot.lane.b32.xlu0 %v1066, 96
    %v1069 = vpop.permute.xlu0 %1068
    %1070 = vrot.lane.b32.xlu0 %v1067, 96
    %v1071 = vpop.permute.xlu0 %1070
    %vm1072 = vcmp.lt.s32.totalorder %v113, 96
    %v1073 = vsel %vm1072, %v1069, %v1071
    %v1074 = vsel %vm1072, %v1071, %v1069
    %s1075 = scalar_lea.vmem %s3, 5
    %v1076 = vld [vmem:[%s1075] ss:$8 sm:$0x3]
    %v1078 = vlaneseq
    %v1079 = vshrl.u32 %v1078, 7
    %v1080 = vsub.s32 0, %v1079
    %v1081 = vrot.slane %v1076, %v1080
    %v1082 = vlaneseq
    %v1083 = vshrl.u32 %v1082, 7
    %v1084 = vsub.s32 1, %v1083
    %v1085 = vrot.slane %v1076, %v1084
    %v1088 = vmul.f32 %v1073, %v1081
    %v1089 = vmul.f32 %v1074, %v1085
    %v1090 = vadd.f32 %v830, %v1088
    %v1091 = vadd.f32 %v831, %v1089
    %s1092 = sld [smem:[#allocation3 + $0x2a]]
    %v1093 = vstv %s1092
    %v1094 = vmul.f32 %v143, %v1093
    %v1095 = vmul.f32 %v144, %v1093
    %s1096 = sld [smem:[#allocation3 + $0x5b]]
    %v1097 = vstv %s1096
    %v1098 = vmul.f32 %v145, %v1097
    %v1099 = vmul.f32 %v146, %v1097
    %s1100 = sld [smem:[#allocation3 + $0x2b]]
    %v1101 = vstv %s1100
    %v1102 = vmul.f32 %v173, %v1101
    %v1103 = vmul.f32 %v174, %v1101
    %v1104 = vadd.f32 %v1094, %v1102
    %v1105 = vadd.f32 %v1095, %v1103
    %s1106 = sld [smem:[#allocation3 + $0x5c]]
    %v1107 = vstv %s1106
    %v1108 = vmul.f32 %v175, %v1107
    %v1109 = vmul.f32 %v176, %v1107
    %v1110 = vadd.f32 %v1098, %v1108
    %v1111 = vadd.f32 %v1099, %v1109
    %s1112 = sld [smem:[#allocation3 + $0x2c]]
    %v1113 = vstv %s1112
    %v1114 = vmul.f32 %v203, %v1113
    %v1115 = vmul.f32 %v204, %v1113
    %v1116 = vadd.f32 %v1104, %v1114
    %v1117 = vadd.f32 %v1105, %v1115
    %s1118 = sld [smem:[#allocation3 + $0x5d]]
    %v1119 = vstv %s1118
    %v1120 = vmul.f32 %v205, %v1119
    %v1121 = vmul.f32 %v206, %v1119
    %v1122 = vadd.f32 %v1110, %v1120
    %v1123 = vadd.f32 %v1111, %v1121
    %s1124 = sld [smem:[#allocation3 + $0x2d]]
    %v1125 = vstv %s1124
    %v1126 = vmul.f32 %v220, %v1125
    %v1127 = vmul.f32 %v221, %v1125
    %v1128 = vmul.f32 %v222, %v1125
    %v1129 = vmul.f32 %v223, %v1125
    %v1134 = vrot.slane %v1128, 7
    %v1135 = vsel %vm103, %v1134, %v1126
    %v1136 = vrot.slane %v1129, 7
    %v1137 = vsel %vm103, %v1136, %v1127
    %v1140 = vadd.f32 %v1116, %v1135
    %v1141 = vadd.f32 %v1117, %v1137
    %s1142 = sld [smem:[#allocation3 + $0x5e]]
    %v1143 = vstv %s1142
    %v1144 = vmul.f32 %v224, %v1143
    %v1145 = vmul.f32 %v225, %v1143
    %v1146 = vmul.f32 %v226, %v1143
    %v1147 = vmul.f32 %v227, %v1143
    %v1152 = vrot.slane %v1146, 7
    %v1153 = vsel %vm103, %v1152, %v1144
    %v1154 = vrot.slane %v1147, 7
    %v1155 = vsel %vm103, %v1154, %v1145
    %v1158 = vadd.f32 %v1122, %v1153
    %v1159 = vadd.f32 %v1123, %v1155
    %s1160 = sld [smem:[#allocation3 + $0x2e]]
    %v1161 = vstv %s1160
    %v1162 = vmul.f32 %v254, %v1161
    %v1163 = vmul.f32 %v255, %v1161
    %v1164 = vadd.f32 %v1140, %v1162
    %v1165 = vadd.f32 %v1141, %v1163
    %s1166 = sld [smem:[#allocation3 + $0x5f]]
    %v1167 = vstv %s1166
    %v1168 = vmul.f32 %v256, %v1167
    %v1169 = vmul.f32 %v257, %v1167
    %v1170 = vadd.f32 %v1158, %v1168
    %v1171 = vadd.f32 %v1159, %v1169
    %s1172 = sld [smem:[#allocation3 + $0x2f]]
    %v1173 = vstv %s1172
    %v1174 = vmul.f32 %v284, %v1173
    %v1175 = vmul.f32 %v285, %v1173
    %v1176 = vadd.f32 %v1164, %v1174
    %v1177 = vadd.f32 %v1165, %v1175
    %s1178 = sld [smem:[#allocation3 + $0x60]]
    %v1179 = vstv %s1178
    %v1180 = vmul.f32 %v286, %v1179
    %v1181 = vmul.f32 %v287, %v1179
    %v1182 = vadd.f32 %v1170, %v1180
    %v1183 = vadd.f32 %v1171, %v1181
    %s1184 = sld [smem:[#allocation3 + $0x30]]
    %v1185 = vstv %s1184
    %v1186 = vmul.f32 %v314, %v1185
    %v1187 = vmul.f32 %v315, %v1185
    %v1188 = vadd.f32 %v1176, %v1186
    %v1189 = vadd.f32 %v1177, %v1187
    %s1190 = sld [smem:[#allocation3 + $0x61]]
    %v1191 = vstv %s1190
    %v1192 = vmul.f32 %v316, %v1191
    %v1193 = vmul.f32 %v317, %v1191
    %v1194 = vadd.f32 %v1182, %v1192
    %v1195 = vadd.f32 %v1183, %v1193
    %v1196 = vadd.f32 %v1188, %v1194
    %v1197 = vadd.f32 %v1189, %v1195
    %1198 = vrot.lane.b32.xlu0 %v1196, 80
    %v1199 = vpop.permute.xlu0 %1198
    %1200 = vrot.lane.b32.xlu0 %v1197, 80
    %v1201 = vpop.permute.xlu0 %1200
    %vm1202 = vcmp.lt.s32.totalorder %v113, 80
    %v1203 = vsel %vm1202, %v1199, %v1201
    %v1204 = vsel %vm1202, %v1201, %v1199
    %s1205 = scalar_lea.vmem %s3, 6
    %v1206 = vld [vmem:[%s1205] ss:$8 sm:$0x3]
    %v1208 = vlaneseq
    %v1209 = vshrl.u32 %v1208, 7
    %v1210 = vsub.s32 0, %v1209
    %v1211 = vrot.slane %v1206, %v1210
    %v1212 = vlaneseq
    %v1213 = vshrl.u32 %v1212, 7
    %v1214 = vsub.s32 1, %v1213
    %v1215 = vrot.slane %v1206, %v1214
    %v1218 = vmul.f32 %v1203, %v1211
    %v1219 = vmul.f32 %v1204, %v1215
    %v1220 = vadd.f32 %v960, %v1218
    %v1221 = vadd.f32 %v961, %v1219
    %v1222 = vadd.f32 %v1220, %v1090
    %v1223 = vadd.f32 %v1221, %v1091
    %v1224 = vxor.u32 %v1222, 2147483648
    %v1225 = vxor.u32 %v1223, 2147483648
    %v1226 = vmul.f32 %v1224, 1.442695
    %v1227 = vpow.pop %v1226
    %v1228 = vmul.f32 %v1225, 1.442695
    %v1229 = vpow.pop %v1228
    %v1230 = vadd.f32 %v1227, 1.0
    %v1231 = vadd.f32 %v1229, 1.0
    %v1232 = vrcp.pop %v1230
    %v1233 = vmul.f32 1.0, %v1232
    %v1234 = vrcp.pop %v1231
    %v1235 = vmul.f32 1.0, %v1234
    %v1238 = vcombine.low %v1233, %v1235
    %v1240 = vunpack.c.l.s4 1983009808
    %v1241 = vunpack.c.0.s8 %v1240
    %v1242 = vlaneseq
    %v1243 = vshrl.u32 %v1242, 7
    %v1244 = vsub.s32 %v1241, %v1243
    %v1245 = vrot.slane %v1238, %v1244
    %1247 = vst [vmem:[%s5] sm:$0xf] %v1245
    // Predicated region
    $region26: #{spatial_attention.1} parent=1 // pred_check
      _
    $region27: #{spatial_attention.1} parent=1 // pred_check_branch
      %1249 = sbr.rel (0) target = $region29
    $region28: #{spatial_attention.1} parent=1 // pred_region
      _
    $region29: #{spatial_attention.1} parent=1 // pred_fallthru
      _
    // Predicated region
    $region30: #{spatial_attention.1} parent=1 // pred_check
      _
    $region31: #{spatial_attention.1} parent=1 // pred_check_branch
      %1251 = sbr.rel (0) target = $region33
    $region32: #{spatial_attention.1} parent=1 // pred_region
      _
    $region33: #{spatial_attention.1} parent=1 // pred_fallthru
      _
    %1252 = vsyncpa [#allocation4], 1

</llo_original>
